<compile_context>
chip_gen: v7x
topology: tpu7x:2x2x1
jax: 0.10.0
libtpu: 0.0.40
codegen_flags: <defaults>
</compile_context>

<pallas_src>
import functools
import math

import jax
import jax.numpy as jnp
from jax.experimental import pallas as pl
from jax.experimental.pallas import tpu as pltpu


def self_attention_kernel(x_ref, wqkv_ref, bqkv_ref, wp_ref, bp_ref, o_ref,
                          q_scr, k_scr, v_scr,
                          *, n_head, n_query_tiles, compute_dtype):
    """Grid = (batch, query_tile).

    qi == 0: one fused (T,C)@(C,3C) projection -> Q/K/V caches in VMEM scratch.
    Every qi: slice cached Q rows, head-batched attention, output projection.
    """
    qi = pl.program_id(1)
    _, T, C = x_ref.shape
    _, tq, _ = o_ref.shape
    H = n_head
    D = C // H
    f32_path = jnp.dtype(compute_dtype) == jnp.dtype(jnp.float32)

    # ---- Fused Q/K/V projection: once per batch element, cached across tiles.
    @pl.when(qi == 0)
    def _():
        xb = x_ref[0].astype(compute_dtype)                                  # (T, C)
        qkv = jnp.dot(xb, wqkv_ref[...],
                      preferred_element_type=jnp.float32) + bqkv_ref[...]    # (T, 3C) f32
        # 1/sqrt(D) is already folded into the Q slice of wqkv/bqkv.
        q_scr[...] = qkv[:, :C].astype(compute_dtype)                        # (T, C)
        k = qkv[:, C:2 * C].astype(compute_dtype)
        v = qkv[:, 2 * C:].astype(compute_dtype)
        k_scr[...] = pltpu.einshape("thd->htd", k.reshape(T, H, D))          # (H, T, D)
        v_scr[...] = pltpu.einshape("thd->htd", v.reshape(T, H, D))          # (H, T, D)

    # ---- Q rows for this query tile (pre-scaled, from the VMEM cache).
    if n_query_tiles == 1:
        q_tile = q_scr[...]                                                  # (tq, C)
    else:
        row0 = pl.multiple_of(qi * tq, tq)
        q_tile = q_scr[pl.ds(row0, tq), :]                                   # (tq, C)
    qh = pltpu.einshape("thd->htd", q_tile.reshape(tq, H, D))                # (H, tq, D)

    # ---- Attention, batched over heads (no per-head loop, no explicit k.T).
    s = jnp.einsum('hqd,hkd->hqk', qh, k_scr[...],
                   preferred_element_type=jnp.float32)                       # (H, tq, T)
    m = jnp.max(s, axis=-1, keepdims=True)
    p = jnp.exp(s - m)
    denom = jnp.sum(p, axis=-1, keepdims=True)                               # (H, tq, 1)
    y = jnp.einsum('hqk,hkd->hqd', p.astype(compute_dtype), v_scr[...],
                   preferred_element_type=jnp.float32)                       # (H, tq, D)
    if f32_path:
        y = y / denom                       # exact divide for strict-f32 checking
    else:
        y = y * pl.reciprocal(denom, approx=True)   # EUP slot, ~free
    y = pltpu.einshape("htd->thd", y).reshape(tq, C)                         # (tq, C)

    # ---- Output projection (dropouts are identity in eval mode).
    out = jnp.dot(y.astype(compute_dtype), wp_ref[...],
                  preferred_element_type=jnp.float32) + bp_ref[...]
    o_ref[0] = out.astype(o_ref.dtype)


def self_attention(x, params, n_head, *, compute_dtype=jnp.bfloat16, q_tile=128):
    B, T, C = x.shape
    assert C % n_head == 0
    D = C // n_head
    wq, bq, wk, bk, wv, bv, wp, bp = params

    scale = 1.0 / math.sqrt(D)
    # Fuse Q|K|V into one (C, 3C) weight; fold 1/sqrt(D) into the Q slice so
    # the kernel never scales per element.  Weights in the MXU compute dtype
    # (bf16 by default, f32 accumulation); biases stay f32.
    wqkv = jnp.concatenate([wq * scale, wk, wv], axis=1).astype(compute_dtype)
    bqkv = jnp.concatenate([bq * scale, bk, bv], axis=1).astype(jnp.float32)
    wp_c = wp.astype(compute_dtype)
    bp_c = bp.astype(jnp.float32)

    # Query-tile grid axis.  Q/K/V caches live in VMEM scratch across the
    # "arbitrary" qi axis, so the fused projection runs once per batch element.
    tq = T if T <= q_tile else q_tile
    assert T % tq == 0, "T must be divisible by the query tile"
    n_qt = T // tq

    kernel = functools.partial(self_attention_kernel, n_head=n_head,
                               n_query_tiles=n_qt, compute_dtype=compute_dtype)
    const = lambda b, qi: (0, 0)

    return pl.pallas_call(
        kernel,
        out_shape=jax.ShapeDtypeStruct((B, T, C), x.dtype),
        grid=(B, n_qt),
        in_specs=[
            pl.BlockSpec((1, T, C), lambda b, qi: (b, 0, 0)),   # x (full seq per batch)
            pl.BlockSpec((C, 3 * C), const),                    # wqkv (Q|K|V fused)
            pl.BlockSpec((1, 3 * C), const),                    # bqkv
            pl.BlockSpec((C, C), const),                        # wp
            pl.BlockSpec((1, C), const),                        # bp
        ],
        out_specs=pl.BlockSpec((1, tq, C), lambda b, qi: (b, qi, 0)),
        scratch_shapes=[
            pltpu.VMEM((T, C), compute_dtype),           # Q cache (pre-scaled), row-major
            pltpu.VMEM((n_head, T, D), compute_dtype),   # K cache, head-major
            pltpu.VMEM((n_head, T, D), compute_dtype),   # V cache, head-major
        ],
        compiler_params=pltpu.CompilerParams(
            dimension_semantics=("parallel", "arbitrary")),
    )(x, wqkv, bqkv, wp_c, bp_c)


def reference_self_attention(x, params, n_head):
    """Pure-JAX reference matching the PyTorch forward (eval mode)."""
    wq, bq, wk, bk, wv, bv, wp, bp = params
    B, T, C = x.shape
    D = C // n_head
    hi = jax.lax.Precision.HIGHEST
    q = (jnp.matmul(x, wq, precision=hi) + bq).reshape(B, T, n_head, D).transpose(0, 2, 1, 3)
    k = (jnp.matmul(x, wk, precision=hi) + bk).reshape(B, T, n_head, D).transpose(0, 2, 1, 3)
    v = (jnp.matmul(x, wv, precision=hi) + bv).reshape(B, T, n_head, D).transpose(0, 2, 1, 3)
    att = jnp.einsum('bhtd,bhsd->bhts', q, k, precision=hi) * (1.0 / math.sqrt(D))
    att = jax.nn.softmax(att, axis=-1)
    y = jnp.einsum('bhts,bhsd->bhtd', att, v, precision=hi)
    y = y.transpose(0, 2, 1, 3).reshape(B, T, C)
    return jnp.matmul(y, wp, precision=hi) + bp


def init_params(key, n_embd):
    """Deterministic parameter init, PyTorch nn.Linear-style uniform(-1/sqrt(in), 1/sqrt(in))."""
    bound = 1.0 / math.sqrt(n_embd)
    keys = jax.random.split(key, 8)
    params = []
    for i in range(4):  # query, key, value, proj
        w = jax.random.uniform(keys[2 * i], (n_embd, n_embd),
                               jnp.float32, -bound, bound)
        b = jax.random.uniform(keys[2 * i + 1], (1, n_embd),
                               jnp.float32, -bound, bound)
        params += [w, b]
    return tuple(params)


if __name__ == "__main__":
    # Small but lane-dense shapes: C = 128 keeps the output store unmasked.
    B, T, C, n_head = 2, 16, 128, 4
    key = jax.random.PRNGKey(0)
    k_x, k_p, k_x2 = jax.random.split(key, 3)
    x = jax.random.normal(k_x, (B, T, C), jnp.float32)
    params = init_params(k_p, C)
    y_ref = reference_self_attention(x, params, n_head)

    # Strict correctness check with f32 MXU inputs / exact divide.
    y_f32 = self_attention(x, params, n_head, compute_dtype=jnp.float32)
    jax.block_until_ready(y_f32)
    assert y_f32.shape == (B, T, C)
    assert jnp.allclose(y_f32, y_ref, atol=2e-4, rtol=2e-4), "f32 mismatch vs reference"

    # Optimized path: bf16 MXU operands, f32 accumulation, approx reciprocal.
    y_bf16 = self_attention(x, params, n_head, compute_dtype=jnp.bfloat16)
    jax.block_until_ready(y_bf16)
    assert y_bf16.shape == (B, T, C)
    assert jnp.allclose(y_bf16, y_ref, atol=5e-2, rtol=5e-2), "bf16 mismatch vs reference"

    # Multi-query-tile path (T=32, tq=16): exercises the Q-cache dynamic slice.
    T2 = 32
    x2 = jax.random.normal(k_x2, (B, T2, C), jnp.float32)
    y2_ref = reference_self_attention(x2, params, n_head)
    y2 = self_attention(x2, params, n_head, compute_dtype=jnp.float32, q_tile=16)
    jax.block_until_ready(y2)
    assert y2.shape == (B, T2, C)
    assert jnp.allclose(y2, y2_ref, atol=2e-4, rtol=2e-4), "multi-tile mismatch vs reference"

    print("KERNEL_OK")
</pallas_src>

<mosaic_0001>
module attributes {stable_mosaic.version = 11 : i64} {
  func.func @self_attention_kernel(%arg0: i32, %arg1: i32, %arg2: memref<1x16x128xf32, #tpu.memory_space<vmem>>, %arg3: memref<128x384xf32, #tpu.memory_space<vmem>>, %arg4: memref<1x384xf32, #tpu.memory_space<vmem>>, %arg5: memref<128x128xf32, #tpu.memory_space<vmem>>, %arg6: memref<1x128xf32, #tpu.memory_space<vmem>>, %arg7: memref<1x16x128xf32, #tpu.memory_space<vmem>>, %arg8: memref<16x128xf32, #tpu.memory_space<vmem>>, %arg9: memref<4x16x32xf32, #tpu.memory_space<vmem>>, %arg10: memref<4x16x32xf32, #tpu.memory_space<vmem>>) attributes {dimension_semantics = [#tpu.dimension_semantics<parallel>, #tpu.dimension_semantics<arbitrary>], iteration_bounds = array<i64: 2, 1>, scalar_prefetch = 0 : i64, scratch_operands = 3 : i64, tpu.core_type = #tpu.core_type<tc>, window_params = [{transform_indices = @transform_0, window_bounds = array<i64: 1, 16, 128>}, {pipeline_mode = #tpu.pipeline_mode<synchronous>, transform_indices = @transform_1, window_bounds = array<i64: 128, 384>}, {pipeline_mode = #tpu.pipeline_mode<synchronous>, transform_indices = @transform_2, window_bounds = array<i64: 1, 384>}, {pipeline_mode = #tpu.pipeline_mode<synchronous>, transform_indices = @transform_3, window_bounds = array<i64: 128, 128>}, {pipeline_mode = #tpu.pipeline_mode<synchronous>, transform_indices = @transform_4, window_bounds = array<i64: 1, 128>}, {transform_indices = @transform_5, window_bounds = array<i64: 1, 16, 128>}]} {
    %c0_i32 = arith.constant 0 : i32
    %0 = arith.cmpi eq, %arg1, %c0_i32 : i32
    %1 = arith.extui %0 : i1 to i32
    %c0_i32_0 = arith.constant 0 : i32
    %2 = arith.cmpi ne, %1, %c0_i32_0 : i32
    scf.if %2 {
      %c0_19 = arith.constant 0 : index
      %c0_20 = arith.constant 0 : index
      %c0_21 = arith.constant 0 : index
      %29 = vector.load %arg2[%c0_19, %c0_20, %c0_21] : memref<1x16x128xf32, #tpu.memory_space<vmem>>, vector<1x16x128xf32>
      %30 = vector.shape_cast %29 : vector<1x16x128xf32> to vector<16x128xf32>
      %c0_22 = arith.constant 0 : index
      %c0_23 = arith.constant 0 : index
      %31 = vector.load %arg3[%c0_22, %c0_23] : memref<128x384xf32, #tpu.memory_space<vmem>>, vector<128x384xf32>
      %cst_24 = arith.constant dense<0.000000e+00> : vector<16x384xf32>
      %32 = tpu.matmul %30, %31, %cst_24 {dimension_numbers = #tpu.dot_dimension_numbers<[1], [0], [0], [1], [0, 0, 1, 1], [], []>} : vector<16x128xf32>, vector<128x384xf32>, vector<16x384xf32> -> vector<16x384xf32>
      %c0_25 = arith.constant 0 : index
      %c0_26 = arith.constant 0 : index
      %33 = vector.load %arg4[%c0_25, %c0_26] : memref<1x384xf32, #tpu.memory_space<vmem>>, vector<1x384xf32>
      %34 = vector.broadcast %33 : vector<1x384xf32> to vector<16x384xf32>
      %35 = arith.addf %32, %34 : vector<16x384xf32>
      %36 = vector.extract_strided_slice %35 {offsets = [0, 0], sizes = [16, 128], strides = [1, 1]} : vector<16x384xf32> to vector<16x128xf32>
      %c0_27 = arith.constant 0 : index
      %c0_28 = arith.constant 0 : index
      %37 = vector.load %arg8[%c0_27, %c0_28] : memref<16x128xf32, #tpu.memory_space<vmem>>, vector<16x128xf32>
      tpu.vector_store %arg8[%c0_27, %c0_28], %36 {strides = array<i32>} : memref<16x128xf32, #tpu.memory_space<vmem>>, vector<16x128xf32>,
      %38 = vector.extract_strided_slice %35 {offsets = [0, 128], sizes = [16, 128], strides = [1, 1]} : vector<16x384xf32> to vector<16x128xf32>
      %39 = vector.extract_strided_slice %35 {offsets = [0, 256], sizes = [16, 128], strides = [1, 1]} : vector<16x384xf32> to vector<16x128xf32>
      %40 = vector.shape_cast %38 : vector<16x128xf32> to vector<16x4x32xf32>
      %41 = tpu.transpose %40, [1, 0, 2] : vector<16x4x32xf32> -> vector<4x16x32xf32>
      %c0_29 = arith.constant 0 : index
      %c0_30 = arith.constant 0 : index
      %c0_31 = arith.constant 0 : index
      %42 = vector.load %arg9[%c0_29, %c0_30, %c0_31] : memref<4x16x32xf32, #tpu.memory_space<vmem>>, vector<4x16x32xf32>
      tpu.vector_store %arg9[%c0_29, %c0_30, %c0_31], %41 {strides = array<i32>} : memref<4x16x32xf32, #tpu.memory_space<vmem>>, vector<4x16x32xf32>,
      %43 = vector.shape_cast %39 : vector<16x128xf32> to vector<16x4x32xf32>
      %44 = tpu.transpose %43, [1, 0, 2] : vector<16x4x32xf32> -> vector<4x16x32xf32>
      %c0_32 = arith.constant 0 : index
      %c0_33 = arith.constant 0 : index
      %c0_34 = arith.constant 0 : index
      %45 = vector.load %arg10[%c0_32, %c0_33, %c0_34] : memref<4x16x32xf32, #tpu.memory_space<vmem>>, vector<4x16x32xf32>
      tpu.vector_store %arg10[%c0_32, %c0_33, %c0_34], %44 {strides = array<i32>} : memref<4x16x32xf32, #tpu.memory_space<vmem>>, vector<4x16x32xf32>,
    } else {
    }
    %c0 = arith.constant 0 : index
    %c0_1 = arith.constant 0 : index
    %3 = vector.load %arg8[%c0, %c0_1] : memref<16x128xf32, #tpu.memory_space<vmem>>, vector<16x128xf32>
    %4 = vector.shape_cast %3 : vector<16x128xf32> to vector<16x4x32xf32>
    %5 = tpu.transpose %4, [1, 0, 2] : vector<16x4x32xf32> -> vector<4x16x32xf32>
    %c0_2 = arith.constant 0 : index
    %c0_3 = arith.constant 0 : index
    %c0_4 = arith.constant 0 : index
    %6 = vector.load %arg9[%c0_2, %c0_3, %c0_4] : memref<4x16x32xf32, #tpu.memory_space<vmem>>, vector<4x16x32xf32>
    "tpu.trace_start"() <{level = 10 : i32, message = "hqd,hkd->hqk"}> : () -> ()
    %cst = arith.constant dense<0.000000e+00> : vector<4x16x16xf32>
    %7 = tpu.matmul %5, %6, %cst {dimension_numbers = #tpu.dot_dimension_numbers<[2], [2], [1], [1], [0, 0, 0, 1, 1, 1], [0], [0]>} : vector<4x16x32xf32>, vector<4x16x32xf32>, vector<4x16x16xf32> -> vector<4x16x16xf32>
    "tpu.trace_stop"() : () -> ()
    %cst_5 = arith.constant dense<0xFF800000> : vector<4x16xf32>
    %8 = vector.multi_reduction <maximumf>, %7, %cst_5 [2] : vector<4x16x16xf32> to vector<4x16xf32>
    %9 = vector.shape_cast %8 : vector<4x16xf32> to vector<4x16x1xf32>
    %10 = vector.broadcast %9 : vector<4x16x1xf32> to vector<4x16x16xf32>
    %11 = arith.subf %7, %10 : vector<4x16x16xf32>
    %12 = math.exp %11 : vector<4x16x16xf32>
    %cst_6 = arith.constant dense<0.000000e+00> : vector<4x16xf32>
    %13 = vector.multi_reduction <add>, %12, %cst_6 [2] : vector<4x16x16xf32> to vector<4x16xf32>
    %14 = vector.shape_cast %13 : vector<4x16xf32> to vector<4x16x1xf32>
    %c0_7 = arith.constant 0 : index
    %c0_8 = arith.constant 0 : index
    %c0_9 = arith.constant 0 : index
    %15 = vector.load %arg10[%c0_7, %c0_8, %c0_9] : memref<4x16x32xf32, #tpu.memory_space<vmem>>, vector<4x16x32xf32>
    "tpu.trace_start"() <{level = 10 : i32, message = "hqk,hkd->hqd"}> : () -> ()
    %cst_10 = arith.constant dense<0.000000e+00> : vector<4x16x32xf32>
    %16 = tpu.matmul %12, %15, %cst_10 {dimension_numbers = #tpu.dot_dimension_numbers<[2], [1], [1], [2], [0, 0, 0, 1, 1, 2], [0], [0]>} : vector<4x16x16xf32>, vector<4x16x32xf32>, vector<4x16x32xf32> -> vector<4x16x32xf32>
    "tpu.trace_stop"() : () -> ()
    %17 = vector.broadcast %14 : vector<4x16x1xf32> to vector<4x16x32xf32>
    %18 = arith.divf %16, %17 : vector<4x16x32xf32>
    %19 = tpu.transpose %18, [1, 0, 2] : vector<4x16x32xf32> -> vector<16x4x32xf32>
    %20 = vector.shape_cast %19 : vector<16x4x32xf32> to vector<16x128xf32>
    %c0_11 = arith.constant 0 : index
    %c0_12 = arith.constant 0 : index
    %21 = vector.load %arg5[%c0_11, %c0_12] : memref<128x128xf32, #tpu.memory_space<vmem>>, vector<128x128xf32>
    %cst_13 = arith.constant dense<0.000000e+00> : vector<16x128xf32>
    %22 = tpu.matmul %20, %21, %cst_13 {dimension_numbers = #tpu.dot_dimension_numbers<[1], [0], [0], [1], [0, 0, 1, 1], [], []>} : vector<16x128xf32>, vector<128x128xf32>, vector<16x128xf32> -> vector<16x128xf32>
    %c0_14 = arith.constant 0 : index
    %c0_15 = arith.constant 0 : index
    %23 = vector.load %arg6[%c0_14, %c0_15] : memref<1x128xf32, #tpu.memory_space<vmem>>, vector<1x128xf32>
    %24 = vector.broadcast %23 : vector<1x128xf32> to vector<16x128xf32>
    %25 = arith.addf %22, %24 : vector<16x128xf32>
    %c0_16 = arith.constant 0 : index
    %c0_17 = arith.constant 0 : index
    %c0_18 = arith.constant 0 : index
    %26 = vector.load %arg7[%c0_16, %c0_17, %c0_18] : memref<1x16x128xf32, #tpu.memory_space<vmem>>, vector<1x16x128xf32>
    %27 = vector.shape_cast %26 : vector<1x16x128xf32> to vector<16x128xf32>
    %28 = vector.shape_cast %25 : vector<16x128xf32> to vector<1x16x128xf32>
    tpu.vector_store %arg7[%c0_16, %c0_17, %c0_18], %28 {strides = array<i32>} : memref<1x16x128xf32, #tpu.memory_space<vmem>>, vector<1x16x128xf32>,
    return
  }
  func.func @transform_0(%arg0: i32, %arg1: i32) -> (i32, i32, i32) {
    %c0_i32 = arith.constant 0 : i32
    %c0_i32_0 = arith.constant 0 : i32
    %c0_i32_1 = arith.constant 0 : i32
    return %arg0, %c0_i32, %c0_i32_0 : i32, i32, i32
  }
  func.func @transform_1(%arg0: i32, %arg1: i32) -> (i32, i32) {
    %c0_i32 = arith.constant 0 : i32
    %c0_i32_0 = arith.constant 0 : i32
    %c0_i32_1 = arith.constant 0 : i32
    return %c0_i32, %c0_i32_0 : i32, i32
  }
  func.func @transform_2(%arg0: i32, %arg1: i32) -> (i32, i32) {
    %c0_i32 = arith.constant 0 : i32
    %c0_i32_0 = arith.constant 0 : i32
    %c0_i32_1 = arith.constant 0 : i32
    return %c0_i32, %c0_i32_0 : i32, i32
  }
  func.func @transform_3(%arg0: i32, %arg1: i32) -> (i32, i32) {
    %c0_i32 = arith.constant 0 : i32
    %c0_i32_0 = arith.constant 0 : i32
    %c0_i32_1 = arith.constant 0 : i32
    return %c0_i32, %c0_i32_0 : i32, i32
  }
  func.func @transform_4(%arg0: i32, %arg1: i32) -> (i32, i32) {
    %c0_i32 = arith.constant 0 : i32
    %c0_i32_0 = arith.constant 0 : i32
    %c0_i32_1 = arith.constant 0 : i32
    return %c0_i32, %c0_i32_0 : i32, i32
  }
  func.func @transform_5(%arg0: i32, %arg1: i32) -> (i32, i32, i32) {
    %c0_i32 = arith.constant 0 : i32
    %c0_i32_0 = arith.constant 0 : i32
    return %arg0, %arg1, %c0_i32 : i32, i32, i32
  }
}

</mosaic_0001>

<llo_original>
// kernel: tpu_custom_call.1
$region0: #{tpu_custom_call.1}
  #allocation0 [shape = 'u32[]', space=smem, size = 0x4, offset = 0x4, fixed_abs, tag = 'smem constant byte address 0x4 - core index']
  #allocation1 [shape = 'u32[144,128]{1,0:T(1,128)}', space=vmem, size = 0x12000, scoped, tag = 'internal scratch']
  #allocation2 [shape = 'f32[16,128]{1,0:T(8,128)}', space=vmem, size = 0x2000, scoped, tag = 'scratch operand']
  #allocation3 [shape = 'f32[4,16,32]{2,1,0:T(8,128)}', space=vmem, size = 0x8000, scoped, tag = 'scratch operand']
  #allocation4 [shape = 'f32[4,16,32]{2,1,0:T(8,128)}', space=vmem, size = 0x8000, scoped, tag = 'scratch operand']
  %s0 = inlined_call_operand.hbm [shape: f32[2,16,128], index: 0, kind: input, shape index: {}]
  %s1 = inlined_call_operand.hbm [shape: f32[128,384], index: 1, kind: input, shape index: {}]
  %s2 = inlined_call_operand.vmem [shape: f32[1,384], index: 2, kind: input, shape index: {}]
  %s3 = inlined_call_operand.hbm [shape: f32[128,128], index: 3, kind: input, shape index: {}]
  %s4 = inlined_call_operand.vmem [shape: f32[1,128], index: 4, kind: input, shape index: {}]
  %s5 = inlined_call_operand.hbm [shape: f32[2,16,128], index: 5, kind: output, shape index: {}]
  %s6 = sld [smem:[#allocation0]]
  $region69: #{tpu_custom_call.1} parent=0
    _
  %s8 = ssub.s32 1, %s6
  %s9 = scalar_select 0, %s8, %s6
  $region1: #{tpu_custom_call.1} parent=0
    #allocation5 [shape = 'u8[16384]{0}', space=vmem, size = 0x4000, scoped, tag = 'input window, operand 0']
    #allocation6 [shape = 's32[2]{0}', space=sflag, size = 0x8, scoped, tag = 'scoped memory for tpu_custom_call.1']
    #allocation7 [shape = 's32[2]{0}', space=sflag, size = 0x8, scoped, tag = 'scoped memory for tpu_custom_call.1']
    #allocation8 [shape = 'u8[196608]{0}', space=vmem, size = 0x30000, scoped, tag = 'input window, operand 1, single buffered']
    #allocation9 [shape = 's32[1]{0}', space=sflag, size = 0x4, scoped, tag = 'scoped memory for tpu_custom_call.1']
    #allocation10 [shape = 'u8[65536]{0}', space=vmem, size = 0x10000, scoped, tag = 'input window, operand 3, single buffered']
    #allocation11 [shape = 'u8[16384]{0}', space=vmem, size = 0x4000, scoped, tag = 'output window, operand 0']
    %10 = vsyncpa [#allocation6], 0
    %s11 = scalar_lea.sflag [#allocation6], 1
    %12 = vsyncpa %s11, 0
    %13 = vsyncpa [#allocation9], 0
    %14 = vsyncpa [#allocation7], 0
    %s15 = scalar_lea.sflag [#allocation7], 1
    %16 = vsyncpa %s15, 0
    loop: start=0, step=1, limit=4
    $region2: #{tpu_custom_call.1} parent=1 // loop_pre_header
      _
    $region3: #{tpu_custom_call.1} parent=1 // loop_header
      %s18 = sphi 0, %s22
      %p19 = scmp.ge.s32.totalorder %s18, 4
      %s25 = sphi 0, %s37
      %s26 = sphi 0, %s33
      %s27 = sphi 0, %s25
      %s28 = sphi 0, %s26
      %s29 = sphi 0, %s27
      %s30 = sphi 0, %s28
      %s40 = sphi 0, %s42
      %s43 = sphi 0, %s40
      %s44 = sphi 0, %s43
      %s60 = sphi 0, %s44
      %s64 = sphi 0, %s64
      %s66 = sphi 0, %s64
      %s67 = sphi 0, %s66
      %s81 = sphi 0, %s67
      %s85 = sphi 0, %s85
      %s87 = sphi 0, %s85
      %s88 = sphi 0, %s87
      %s102 = sphi 0, %s88
      %s106 = sphi 0, %s106
      %s108 = sphi 0, %s106
      %s109 = sphi 0, %s108
      %s123 = sphi 0, %s109
      %s127 = sphi 0, %s127
      %s129 = sphi 0, %s127
      %s130 = sphi 0, %s129
      %s144 = sphi 0, %s130
      %s152 = sphi 0, %s154
      %s155 = sphi 0, %s152
      %s156 = sphi 0, %s155
      %s172 = sphi 0, %s156
    $region4: #{tpu_custom_call.1} parent=1 // loop_header_branch
      %21 = sbr.rel (%p19) target = $region8
    $region5: #{tpu_custom_call.1} parent=1 // loop_body
      %s23 = ssub.s32 %s18, 1
      %s24 = ssub.s32 %s18, 2
      %s31 = sadd.s32 1, %s26
      %p32 = scmp.ge.s32.totalorder %s31, 1
      %s33 = scalar_select %p32, 0, %s31
      %s34 = sadd.s32 1, %s25
      %s35 = scalar_select %p32, %s34, %s25
      %p36 = scmp.ge.s32.totalorder %s35, 2
      %s37 = scalar_select %p36, 0, %s35
      %s38 = ssub.s32 %s25, %s37
      %p39 = scmp.eq.s32.totalorder %s38, 0
      %s41 = sadd.s32 %s40, 1
      %s42 = scalar_select %p39, %s40, %s41
      %p45 = pneg %p39
      %p46 = scmp.eq.s32.totalorder %s18, 1
      %p47 = por %p45, %p46
      %p48 = scmp.ne.s32.totalorder %s40, %s43
      %p49 = scmp.eq.s32.totalorder %s18, 0
      %p50 = por %p48, %p49
      %p51 = scmp.ne.s32.totalorder %s40, %s43
      %p52 = scmp.eq.s32.totalorder %s23, 1
      %p53 = por %p51, %p52
      %p54 = scmp.ne.s32.totalorder %s43, %s44
      %p55 = scmp.eq.s32.totalorder %s23, 0
      %p56 = por %p54, %p55
      %p57 = scmp.ne.s32.totalorder %s43, %s44
      %p58 = scmp.eq.s32.totalorder %s24, 1
      %p59 = por %p57, %p58
      %p61 = scmp.ne.s32.totalorder %s44, %s60
      %p62 = scmp.eq.s32.totalorder %s24, 0
      %p63 = por %p61, %p62
      %s65 = sadd.s32 %s64, 1
      %p68 = scmp.eq.s32.totalorder %s18, 1
      %p69 = scmp.ne.s32.totalorder %s64, %s66
      %p70 = scmp.eq.s32.totalorder %s18, 0
      %p71 = por %p69, %p70
      %p72 = scmp.ne.s32.totalorder %s64, %s66
      %p73 = scmp.eq.s32.totalorder %s23, 1
      %p74 = por %p72, %p73
      %p75 = scmp.ne.s32.totalorder %s66, %s67
      %p76 = scmp.eq.s32.totalorder %s23, 0
      %p77 = por %p75, %p76
      %p78 = scmp.ne.s32.totalorder %s66, %s67
      %p79 = scmp.eq.s32.totalorder %s24, 1
      %p80 = por %p78, %p79
      %p82 = scmp.ne.s32.totalorder %s67, %s81
      %p83 = scmp.eq.s32.totalorder %s24, 0
      %p84 = por %p82, %p83
      %s86 = sadd.s32 %s85, 1
      %p89 = scmp.eq.s32.totalorder %s18, 1
      %p90 = scmp.ne.s32.totalorder %s85, %s87
      %p91 = scmp.eq.s32.totalorder %s18, 0
      %p92 = por %p90, %p91
      %p93 = scmp.ne.s32.totalorder %s85, %s87
      %p94 = scmp.eq.s32.totalorder %s23, 1
      %p95 = por %p93, %p94
      %p96 = scmp.ne.s32.totalorder %s87, %s88
      %p97 = scmp.eq.s32.totalorder %s23, 0
      %p98 = por %p96, %p97
      %p99 = scmp.ne.s32.totalorder %s87, %s88
      %p100 = scmp.eq.s32.totalorder %s24, 1
      %p101 = por %p99, %p100
      %p103 = scmp.ne.s32.totalorder %s88, %s102
      %p104 = scmp.eq.s32.totalorder %s24, 0
      %p105 = por %p103, %p104
      %s107 = sadd.s32 %s106, 1
      %p110 = scmp.eq.s32.totalorder %s18, 1
      %p111 = scmp.ne.s32.totalorder %s106, %s108
      %p112 = scmp.eq.s32.totalorder %s18, 0
      %p113 = por %p111, %p112
      %p114 = scmp.ne.s32.totalorder %s106, %s108
      %p115 = scmp.eq.s32.totalorder %s23, 1
      %p116 = por %p114, %p115
      %p117 = scmp.ne.s32.totalorder %s108, %s109
      %p118 = scmp.eq.s32.totalorder %s23, 0
      %p119 = por %p117, %p118
      %p120 = scmp.ne.s32.totalorder %s108, %s109
      %p121 = scmp.eq.s32.totalorder %s24, 1
      %p122 = por %p120, %p121
      %p124 = scmp.ne.s32.totalorder %s109, %s123
      %p125 = scmp.eq.s32.totalorder %s24, 0
      %p126 = por %p124, %p125
      %s128 = sadd.s32 %s127, 1
      %p131 = scmp.eq.s32.totalorder %s18, 1
      %p132 = scmp.ne.s32.totalorder %s127, %s129
      %p133 = scmp.eq.s32.totalorder %s18, 0
      %p134 = por %p132, %p133
      %p135 = scmp.ne.s32.totalorder %s127, %s129
      %p136 = scmp.eq.s32.totalorder %s23, 1
      %p137 = por %p135, %p136
      %p138 = scmp.ne.s32.totalorder %s129, %s130
      %p139 = scmp.eq.s32.totalorder %s23, 0
      %p140 = por %p138, %p139
      %p141 = scmp.ne.s32.totalorder %s129, %s130
      %p142 = scmp.eq.s32.totalorder %s24, 1
      %p143 = por %p141, %p142
      %p145 = scmp.ne.s32.totalorder %s130, %s144
      %p146 = scmp.eq.s32.totalorder %s24, 0
      %p147 = por %p145, %p146
      %s148 = ssub.s32 %s25, %s37
      %s149 = ssub.s32 %s26, %s33
      %s150 = sor.u32 %s148, %s149
      %p151 = scmp.eq.s32.totalorder %s150, 0
      %s153 = sadd.s32 %s152, 1
      %s154 = scalar_select %p151, %s152, %s153
      %p157 = pneg %p151
      %p158 = scmp.eq.s32.totalorder %s18, 1
      %p159 = por %p157, %p158
      %p160 = scmp.ne.s32.totalorder %s152, %s155
      %p161 = scmp.eq.s32.totalorder %s18, 0
      %p162 = por %p160, %p161
      %p163 = scmp.ne.s32.totalorder %s152, %s155
      %p164 = scmp.eq.s32.totalorder %s23, 1
      %p165 = por %p163, %p164
      %p166 = scmp.ne.s32.totalorder %s155, %s156
      %p167 = scmp.eq.s32.totalorder %s23, 0
      %p168 = por %p166, %p167
      %p169 = scmp.ne.s32.totalorder %s155, %s156
      %p170 = scmp.eq.s32.totalorder %s24, 1
      %p171 = por %p169, %p170
      %p173 = scmp.ne.s32.totalorder %s156, %s172
      %p174 = scmp.eq.s32.totalorder %s24, 0
      %p175 = por %p173, %p174
      %p176 = scmp.le.s32.totalorder 1, %s18
      %p177 = scmp.lt.s32.totalorder %s18, 3
      %p178 = pnand %p176, %p177
      %p179 = pneg %p178
      // Predicated region
      $region9: #{tpu_custom_call.1} parent=5 // pred_check
        _
      $region10: #{tpu_custom_call.1} parent=5 // pred_check_branch
        %181 = sbr.rel (%p178) target = $region12
      $region11: #{tpu_custom_call.1} parent=5 // pred_region
        %s182 = ssub.s32 %s18, 1
        // Predicated region
        $region13: #{tpu_custom_call.1} parent=11 // pred_check
          %p183 = pneg %p77
        $region14: #{tpu_custom_call.1} parent=11 // pred_check_branch
          %185 = sbr.rel (%p183) target = $region16
        $region15: #{tpu_custom_call.1} parent=11 // pred_region
          %s187 = ssub.s32 6144, 6144
          %188 = vsyncadd [#allocation9], %s187
          %s189 = sshll.u32 [#allocation8], 4
          %s190 = int_to_ptr.vmem [resolvable:$true] %s189
          %195 = dma.hbm_to_vmem [thread:$0]  %s1, 6144, %s190, [#allocation9], 384, 384, 24
        $region16: #{tpu_custom_call.1} parent=11 // pred_fallthru
          _
        // Predicated region
        $region17: #{tpu_custom_call.1} parent=11 // pred_check
          %p196 = pneg %p98
        $region18: #{tpu_custom_call.1} parent=11 // pred_check_branch
          %198 = sbr.rel (%p196) target = $region20
        $region19: #{tpu_custom_call.1} parent=11 // pred_region
          _
        $region20: #{tpu_custom_call.1} parent=11 // pred_fallthru
          _
        // Predicated region
        $region21: #{tpu_custom_call.1} parent=11 // pred_check
          %p199 = pneg %p119
        $region22: #{tpu_custom_call.1} parent=11 // pred_check_branch
          %201 = sbr.rel (%p199) target = $region24
        $region23: #{tpu_custom_call.1} parent=11 // pred_region
          %s203 = ssub.s32 2048, 2048
          %204 = vsyncadd [#allocation9], %s203
          %s205 = sshll.u32 [#allocation10], 4
          %s206 = int_to_ptr.vmem [resolvable:$true] %s205
          %211 = dma.hbm_to_vmem [thread:$0]  %s3, 2048, %s206, [#allocation9], 128, 128, 8
        $region24: #{tpu_custom_call.1} parent=11 // pred_fallthru
          _
        // Predicated region
        $region25: #{tpu_custom_call.1} parent=11 // pred_check
          %p212 = pneg %p140
        $region26: #{tpu_custom_call.1} parent=11 // pred_check_branch
          %214 = sbr.rel (%p212) target = $region28
        $region27: #{tpu_custom_call.1} parent=11 // pred_region
          _
        $region28: #{tpu_custom_call.1} parent=11 // pred_fallthru
          _
      $region12: #{tpu_custom_call.1} parent=5 // pred_fallthru
        _
      %p215 = scmp.lt.s32.totalorder %s18, 2
      // Predicated region
      $region29: #{tpu_custom_call.1} parent=5 // pred_check
        %p216 = pneg %p215
      $region30: #{tpu_custom_call.1} parent=5 // pred_check_branch
        %218 = sbr.rel (%p216) target = $region32
      $region31: #{tpu_custom_call.1} parent=5 // pred_region
        // Predicated region
        $region33: #{tpu_custom_call.1} parent=31 // pred_check
          %p219 = pneg %p50
        $region34: #{tpu_custom_call.1} parent=31 // pred_check_branch
          %221 = sbr.rel (%p219) target = $region36
        $region35: #{tpu_custom_call.1} parent=31 // pred_region
          %s222 = sand.u32 %s40, 1
          %s223 = scalar_lea.sflag [#allocation6], %s222
          %s224 = sand.u32 %s40, 1
          %s225 = smul.addr %s224, 16
          %s226 = scalar_lea.vmem [#allocation5], %s225
          %s228 = ssub.s32 256, 256
          %229 = vsyncadd %s223, %s228
          %s230 = smul.addr %s25, 2
          %s231 = smul.addr %s230, 128
          %s232 = scalar_lea.hbm %s0, %s231
          %s233 = sshll.u32 %s226, 4
          %s234 = int_to_ptr.vmem [resolvable:$true] %s233
          %239 = dma.hbm_to_vmem [thread:$0]  %s232, 256, %s234, %s223, 128, 128, 8
        $region36: #{tpu_custom_call.1} parent=31 // pred_fallthru
          _
      $region32: #{tpu_custom_call.1} parent=5 // pred_fallthru
        _
      %p240 = scmp.le.s32.totalorder 1, %s18
      %p241 = scmp.lt.s32.totalorder %s18, 3
      %p242 = pnand %p240, %p241
      %p243 = pneg %p242
      // Predicated region
      $region37: #{tpu_custom_call.1} parent=5 // pred_check
        _
      $region38: #{tpu_custom_call.1} parent=5 // pred_check_branch
        %245 = sbr.rel (%p242) target = $region40
      $region39: #{tpu_custom_call.1} parent=5 // pred_region
        %s246 = ssub.s32 %s18, 1
        %s247 = sand.u32 %s43, 1
        %s248 = scalar_lea.sflag [#allocation6], %s247
        %s249 = sand.u32 %s43, 1
        %s250 = smul.addr %s249, 16
        %s251 = scalar_lea.vmem [#allocation5], %s250
        // Predicated region
        $region41: #{tpu_custom_call.1} parent=39 // pred_check
          %p252 = pneg %p56
        $region42: #{tpu_custom_call.1} parent=39 // pred_check_branch
          %254 = sbr.rel (%p252) target = $region44
        $region43: #{tpu_custom_call.1} parent=39 // pred_region
          %255 = dma.done %s248, 256
        $region44: #{tpu_custom_call.1} parent=39 // pred_fallthru
          _
        // Predicated region
        $region45: #{tpu_custom_call.1} parent=39 // pred_check
          %p256 = pneg %p77
        $region46: #{tpu_custom_call.1} parent=39 // pred_check_branch
          %258 = sbr.rel (%p256) target = $region48
        $region47: #{tpu_custom_call.1} parent=39 // pred_region
          %259 = dma.done [#allocation9], 6144
        $region48: #{tpu_custom_call.1} parent=39 // pred_fallthru
          _
        // Predicated region
        $region49: #{tpu_custom_call.1} parent=39 // pred_check
          %p260 = pneg %p119
        $region50: #{tpu_custom_call.1} parent=39 // pred_check_branch
          %262 = sbr.rel (%p260) target = $region52
        $region51: #{tpu_custom_call.1} parent=39 // pred_region
          %263 = dma.done [#allocation9], 2048
        $region52: #{tpu_custom_call.1} parent=39 // pred_fallthru
          _
        %s264 = sand.u32 %s43, 1
        %s265 = scalar_lea.sflag [#allocation6], %s264
        %s266 = sand.u32 %s43, 1
        %s267 = smul.addr %s266, 16
        %s268 = scalar_lea.vmem [#allocation5], %s267
        %p269 = pneg %p56
        %p270 = pneg %p53
        %p271 = pneg %p77
        %p272 = pneg %p74
        %p273 = pneg %p98
        %p274 = pneg %p95
        %p275 = pneg %p119
        %p276 = pneg %p116
        %p277 = pneg %p140
        %p278 = pneg %p137
        %p279 = pneg %p168
        %p280 = pneg %p165
        %s281 = sand.u32 %s155, 1
        %s282 = scalar_lea.sflag [#allocation7], %s281
        %s283 = sand.u32 %s155, 1
        %s284 = smul.addr %s283, 16
        %s285 = scalar_lea.vmem [#allocation11], %s284
        %s286 = smul.u32 2, %s28
        %p287 = scmp.eq.s32.totalorder %s28, 0
        // Predicated region
        $region53: #{tpu_custom_call.1} parent=39 // pred_check
          %p288 = pneg %p287
        $region54: #{tpu_custom_call.1} parent=39 // pred_check_branch
          %290 = sbr.rel (%p288) target = $region56
        $region55: #{tpu_custom_call.1} parent=39 // pred_region
          %v291 = vld [vmem:[%s251] sm:$0xff]
          %v292 = vld [vmem:[%s251 + $0x8] sm:$0xff]
          %v293 = vld [vmem:[#allocation8] sm:$0xff]
          %v294 = vld [vmem:[#allocation8 + $0x8] sm:$0xff]
          %v295 = vld [vmem:[#allocation8 + $0x10] sm:$0xff]
          %v296 = vld [vmem:[#allocation8 + $0x18] sm:$0xff]
          %v297 = vld [vmem:[#allocation8 + $0x20] sm:$0xff]
          %v298 = vld [vmem:[#allocation8 + $0x28] sm:$0xff]
          %v299 = vld [vmem:[#allocation8 + $0x30] sm:$0xff]
          %v300 = vld [vmem:[#allocation8 + $0x38] sm:$0xff]
          %v301 = vld [vmem:[#allocation8 + $0x40] sm:$0xff]
          %v302 = vld [vmem:[#allocation8 + $0x48] sm:$0xff]
          %v303 = vld [vmem:[#allocation8 + $0x50] sm:$0xff]
          %v304 = vld [vmem:[#allocation8 + $0x58] sm:$0xff]
          %v305 = vld [vmem:[#allocation8 + $0x60] sm:$0xff]
          %v306 = vld [vmem:[#allocation8 + $0x68] sm:$0xff]
          %v307 = vld [vmem:[#allocation8 + $0x70] sm:$0xff]
          %v308 = vld [vmem:[#allocation8 + $0x78] sm:$0xff]
          %v309 = vld [vmem:[#allocation8 + $0x80] sm:$0xff]
          %v310 = vld [vmem:[#allocation8 + $0x88] sm:$0xff]
          %v311 = vld [vmem:[#allocation8 + $0x90] sm:$0xff]
          %v312 = vld [vmem:[#allocation8 + $0x98] sm:$0xff]
          %v313 = vld [vmem:[#allocation8 + $0xa0] sm:$0xff]
          %v314 = vld [vmem:[#allocation8 + $0xa8] sm:$0xff]
          %v315 = vld [vmem:[#allocation8 + $0xb0] sm:$0xff]
          %v316 = vld [vmem:[#allocation8 + $0xb8] sm:$0xff]
          %v317 = vld [vmem:[#allocation8 + $0xc0] sm:$0xff]
          %v318 = vld [vmem:[#allocation8 + $0xc8] sm:$0xff]
          %v319 = vld [vmem:[#allocation8 + $0xd0] sm:$0xff]
          %v320 = vld [vmem:[#allocation8 + $0xd8] sm:$0xff]
          %v321 = vld [vmem:[#allocation8 + $0xe0] sm:$0xff]
          %v322 = vld [vmem:[#allocation8 + $0xe8] sm:$0xff]
          %v323 = vld [vmem:[#allocation8 + $0xf0] sm:$0xff]
          %v324 = vld [vmem:[#allocation8 + $0xf8] sm:$0xff]
          %v325 = vld [vmem:[#allocation8 + $0x100] sm:$0xff]
          %v326 = vld [vmem:[#allocation8 + $0x108] sm:$0xff]
          %v327 = vld [vmem:[#allocation8 + $0x110] sm:$0xff]
          %v328 = vld [vmem:[#allocation8 + $0x118] sm:$0xff]
          %v329 = vld [vmem:[#allocation8 + $0x120] sm:$0xff]
          %v330 = vld [vmem:[#allocation8 + $0x128] sm:$0xff]
          %v331 = vld [vmem:[#allocation8 + $0x130] sm:$0xff]
          %v332 = vld [vmem:[#allocation8 + $0x138] sm:$0xff]
          %v333 = vld [vmem:[#allocation8 + $0x140] sm:$0xff]
          %v334 = vld [vmem:[#allocation8 + $0x148] sm:$0xff]
          %v335 = vld [vmem:[#allocation8 + $0x150] sm:$0xff]
          %v336 = vld [vmem:[#allocation8 + $0x158] sm:$0xff]
          %v337 = vld [vmem:[#allocation8 + $0x160] sm:$0xff]
          %v338 = vld [vmem:[#allocation8 + $0x168] sm:$0xff]
          %v339 = vld [vmem:[#allocation8 + $0x170] sm:$0xff]
          %v340 = vld [vmem:[#allocation8 + $0x178] sm:$0xff]
          %v341 = vld [vmem:[%s2] sm:$0x7]
          %v343 = vlaneseq
          %v344 = vshrl.u32 %v343, 7
          %v345 = vsub.s32 0, %v344
          %v346 = vrot.slane %v341, %v345
          %v347 = vlaneseq
          %v348 = vshrl.u32 %v347, 7
          %v349 = vsub.s32 1, %v348
          %v350 = vrot.slane %v341, %v349
          %v351 = vlaneseq
          %v352 = vshrl.u32 %v351, 7
          %v353 = vsub.s32 2, %v352
          %v354 = vrot.slane %v341, %v353
          %358 = vmatprep.subr.mxu0 %v294
          %359 = vmatpush1.msra.mxu0 %v293
          %360 = vmatprep.subr.mxu0 %v297
          %361 = vmatpush1.msra.mxu0 %v296
          %362 = vmatprep.subr.mxu0 %v300
          %363 = vmatpush1.msra.mxu0 %v299
          %364 = vmatprep.subr.mxu0 %v303
          %365 = vmatpush1.msra.mxu0 %v302
          %366 = vmatprep.subr.mxu0 %v306
          %367 = vmatpush1.msra.mxu0 %v305
          %368 = vmatprep.subr.mxu0 %v309
          %369 = vmatpush1.msra.mxu0 %v308
          %370 = vmatprep.subr.mxu0 %v312
          %371 = vmatpush1.msra.mxu0 %v311
          %372 = vmatprep.subr.mxu0 %v315
          %373 = vmatpush1.msra.mxu0 %v314
          %374 = vmatprep.subr.mxu0 %v318
          %375 = vmatpush1.msra.mxu0 %v317
          %376 = vmatprep.subr.mxu0 %v321
          %377 = vmatpush1.msra.mxu0 %v320
          %378 = vmatprep.subr.mxu0 %v324
          %379 = vmatpush1.msra.mxu0 %v323
          %380 = vmatprep.subr.mxu0 %v327
          %381 = vmatpush1.msra.mxu0 %v326
          %382 = vmatprep.subr.mxu0 %v330
          %383 = vmatpush1.msra.mxu0 %v329
          %384 = vmatprep.subr.mxu0 %v333
          %385 = vmatpush1.msra.mxu0 %v332
          %386 = vmatprep.subr.mxu0 %v336
          %387 = vmatpush1.msra.mxu0 %v335
          %388 = vmatprep.subr.mxu0 %v339
          %389 = vmatpush1.msra.mxu0 %v338
          %390 = vmatprep.subr.mxu0 0.0
          %391 = vmatpush1.msra.mxu0 0.0
          %392 = vmatprep.subr.mxu0 0.0
          %393 = vmatpush1.msra.mxu0 0.0
          %394 = vmatprep.subr.mxu0 0.0
          %395 = vmatpush1.msra.mxu0 0.0
          %396 = vmatprep.subr.mxu0 0.0
          %397 = vmatpush1.msra.mxu0 0.0
          %398 = vmatprep.subr.mxu0 0.0
          %399 = vmatpush1.msra.mxu0 0.0
          %400 = vmatprep.subr.mxu0 0.0
          %401 = vmatpush1.msra.mxu0 0.0
          %402 = vmatprep.subr.mxu0 0.0
          %403 = vmatpush1.msra.mxu0 0.0
          %404 = vmatprep.subr.mxu0 0.0
          %405 = vmatpush1.msra.mxu0 0.0
          %406 = vmatprep.subr.mxu0 0.0
          %407 = vmatpush1.msra.mxu0 0.0
          %408 = vmatprep.subr.mxu0 0.0
          %409 = vmatpush1.msra.mxu0 0.0
          %410 = vmatprep.subr.mxu0 0.0
          %411 = vmatpush1.msra.mxu0 0.0
          %412 = vmatprep.subr.mxu0 0.0
          %413 = vmatpush1.msra.mxu0 0.0
          %414 = vmatprep.subr.mxu0 0.0
          %415 = vmatpush1.msra.mxu0 0.0
          %416 = vmatprep.subr.mxu0 0.0
          %417 = vmatpush1.msra.mxu0 0.0
          %418 = vmatprep.subr.mxu0 0.0
          %419 = vmatpush1.msra.mxu0 0.0
          %420 = vmatprep.subr.mxu0 0.0
          %421 = vmatpush1.msra.mxu0 0.0
          %422 = vmatprep.mubr.f32.mxu0 0.0
          %423 = vmatmul.mubr.f32.gmra.mrb[0].mxu0 %v291
          %v424 = vpop.f32.mrb[0].mxu0
          %v425 = vadd.f32 %v346, %v424
          %v426 = vpop.f32.mrb[0].mxu0
          %v427 = vadd.f32 %v350, %v426
          %428 = vmatprep.mubr.f32.mxu0 0.0
          %429 = vmatmul.mubr.f32.gmra.mrb[0].mxu0 %v292
          %v430 = vpop.f32.mrb[0].mxu0
          %v431 = vadd.f32 %v346, %v430
          %v432 = vpop.f32.mrb[0].mxu0
          %v433 = vadd.f32 %v350, %v432
          %434 = vdwg.mxu0
          %435 = vmatprep.subr.mxu0 0.0
          %436 = vmatpush1.msra.mxu0 %v295
          %437 = vmatprep.subr.mxu0 0.0
          %438 = vmatpush1.msra.mxu0 %v298
          %439 = vmatprep.subr.mxu0 0.0
          %440 = vmatpush1.msra.mxu0 %v301
          %441 = vmatprep.subr.mxu0 0.0
          %442 = vmatpush1.msra.mxu0 %v304
          %443 = vmatprep.subr.mxu0 0.0
          %444 = vmatpush1.msra.mxu0 %v307
          %445 = vmatprep.subr.mxu0 0.0
          %446 = vmatpush1.msra.mxu0 %v310
          %447 = vmatprep.subr.mxu0 0.0
          %448 = vmatpush1.msra.mxu0 %v313
          %449 = vmatprep.subr.mxu0 0.0
          %450 = vmatpush1.msra.mxu0 %v316
          %451 = vmatprep.subr.mxu0 0.0
          %452 = vmatpush1.msra.mxu0 %v319
          %453 = vmatprep.subr.mxu0 0.0
          %454 = vmatpush1.msra.mxu0 %v322
          %455 = vmatprep.subr.mxu0 0.0
          %456 = vmatpush1.msra.mxu0 %v325
          %457 = vmatprep.subr.mxu0 0.0
          %458 = vmatpush1.msra.mxu0 %v328
          %459 = vmatprep.subr.mxu0 0.0
          %460 = vmatpush1.msra.mxu0 %v331
          %461 = vmatprep.subr.mxu0 0.0
          %462 = vmatpush1.msra.mxu0 %v334
          %463 = vmatprep.subr.mxu0 0.0
          %464 = vmatpush1.msra.mxu0 %v337
          %465 = vmatprep.subr.mxu0 0.0
          %466 = vmatpush1.msra.mxu0 %v340
          %467 = vmatprep.subr.mxu0 0.0
          %468 = vmatpush1.msra.mxu0 0.0
          %469 = vmatprep.subr.mxu0 0.0
          %470 = vmatpush1.msra.mxu0 0.0
          %471 = vmatprep.subr.mxu0 0.0
          %472 = vmatpush1.msra.mxu0 0.0
          %473 = vmatprep.subr.mxu0 0.0
          %474 = vmatpush1.msra.mxu0 0.0
          %475 = vmatprep.subr.mxu0 0.0
          %476 = vmatpush1.msra.mxu0 0.0
          %477 = vmatprep.subr.mxu0 0.0
          %478 = vmatpush1.msra.mxu0 0.0
          %479 = vmatprep.subr.mxu0 0.0
          %480 = vmatpush1.msra.mxu0 0.0
          %481 = vmatprep.subr.mxu0 0.0
          %482 = vmatpush1.msra.mxu0 0.0
          %483 = vmatprep.subr.mxu0 0.0
          %484 = vmatpush1.msra.mxu0 0.0
          %485 = vmatprep.subr.mxu0 0.0
          %486 = vmatpush1.msra.mxu0 0.0
          %487 = vmatprep.subr.mxu0 0.0
          %488 = vmatpush1.msra.mxu0 0.0
          %489 = vmatprep.subr.mxu0 0.0
          %490 = vmatpush1.msra.mxu0 0.0
          %491 = vmatprep.subr.mxu0 0.0
          %492 = vmatpush1.msra.mxu0 0.0
          %493 = vmatprep.subr.mxu0 0.0
          %494 = vmatpush1.msra.mxu0 0.0
          %495 = vmatprep.subr.mxu0 0.0
          %496 = vmatpush1.msra.mxu0 0.0
          %497 = vmatprep.subr.mxu0 0.0
          %498 = vmatpush1.msra.mxu0 0.0
          %499 = vmatprep.mubr.f32.mxu0 0.0
          %500 = vmatmul.mubr.f32.gmra.mrb[0].mxu0 %v291
          %v501 = vpop.f32.mrb[0].mxu0
          %v502 = vadd.f32 %v354, %v501
          %v503 = vpop.f32.mrb[0].mxu0
          %504 = vmatprep.mubr.f32.mxu0 0.0
          %505 = vmatmul.mubr.f32.gmra.mrb[0].mxu0 %v292
          %v506 = vpop.f32.mrb[0].mxu0
          %v507 = vadd.f32 %v354, %v506
          %v508 = vpop.f32.mrb[0].mxu0
          %509 = vdwg.mxu0
          %510 = vst [vmem:[#allocation2] sm:$0xff] %v425
          %511 = vst [vmem:[#allocation2 + $0x8] sm:$0xff] %v431
          %514 = vrot.lane.b32.xlu0 %v427, 96
          %v515 = vpop.permute.xlu0 %514
          %516 = vrot.lane.b32.xlu0 %v433, 96
          %v517 = vpop.permute.xlu0 %516
          %520 = vrot.lane.b32.xlu0 %v427, 64
          %v521 = vpop.permute.xlu0 %520
          %522 = vrot.lane.b32.xlu0 %v433, 64
          %v523 = vpop.permute.xlu0 %522
          %526 = vrot.lane.b32.xlu0 %v427, 32
          %v527 = vpop.permute.xlu0 %526
          %528 = vrot.lane.b32.xlu0 %v433, 32
          %v529 = vpop.permute.xlu0 %528
          %v532 = vcombine.low %v427, %v521
          %v533 = vcombine.high %v427, %v521
          %v535 = vunpack.c.l.s4 1983009808
          %v536 = vunpack.c.0.s8 %v535
          %v537 = vlaneseq
          %v538 = vshrl.u32 %v537, 7
          %v539 = vsub.s32 %v536, %v538
          %v540 = vrot.slane %v532, %v539
          %v542 = vunpack.c.l.s4 1983009808
          %v543 = vunpack.c.0.s8 %v542
          %v544 = vlaneseq
          %v545 = vshrl.u32 %v544, 7
          %v546 = vsub.s32 %v543, %v545
          %v547 = vrot.slane %v533, %v546
          %v548 = vcombine.low %v515, %v527
          %v549 = vcombine.high %v515, %v527
          %v551 = vunpack.c.l.s4 1983009808
          %v552 = vunpack.c.0.s8 %v551
          %v553 = vlaneseq
          %v554 = vshrl.u32 %v553, 7
          %v555 = vsub.s32 %v552, %v554
          %v556 = vrot.slane %v548, %v555
          %v558 = vunpack.c.l.s4 1983009808
          %v559 = vunpack.c.0.s8 %v558
          %v560 = vlaneseq
          %v561 = vshrl.u32 %v560, 7
          %v562 = vsub.s32 %v559, %v561
          %v563 = vrot.slane %v549, %v562
          %v564 = vcombine.low %v540, %v556
          %v565 = vcombine.high %v540, %v556
          %v567 = vunpack.c.l.s4 1934713408
          %v568 = vunpack.c.0.s8 %v567
          %v569 = vlaneseq
          %v570 = vshrl.u32 %v569, 7
          %v571 = vsub.s32 %v568, %v570
          %v572 = vrot.slane %v564, %v571
          %v574 = vunpack.c.l.s4 1934713408
          %v575 = vunpack.c.0.s8 %v574
          %v576 = vlaneseq
          %v577 = vshrl.u32 %v576, 7
          %v578 = vsub.s32 %v575, %v577
          %v579 = vrot.slane %v565, %v578
          %v580 = vcombine.low %v547, %v563
          %v581 = vcombine.high %v547, %v563
          %v583 = vunpack.c.l.s4 1934713408
          %v584 = vunpack.c.0.s8 %v583
          %v585 = vlaneseq
          %v586 = vshrl.u32 %v585, 7
          %v587 = vsub.s32 %v584, %v586
          %v588 = vrot.slane %v580, %v587
          %v590 = vunpack.c.l.s4 1934713408
          %v591 = vunpack.c.0.s8 %v590
          %v592 = vlaneseq
          %v593 = vshrl.u32 %v592, 7
          %v594 = vsub.s32 %v591, %v593
          %v595 = vrot.slane %v581, %v594
          %v596 = vcombine.high %v572, 0.0
          %v597 = vcombine.high %v579, 0.0
          %v598 = vcombine.high %v588, 0.0
          %v599 = vcombine.high %v595, 0.0
          %v600 = vcombine.low %v433, %v523
          %v601 = vcombine.high %v433, %v523
          %v603 = vunpack.c.l.s4 1983009808
          %v604 = vunpack.c.0.s8 %v603
          %v605 = vlaneseq
          %v606 = vshrl.u32 %v605, 7
          %v607 = vsub.s32 %v604, %v606
          %v608 = vrot.slane %v600, %v607
          %v610 = vunpack.c.l.s4 1983009808
          %v611 = vunpack.c.0.s8 %v610
          %v612 = vlaneseq
          %v613 = vshrl.u32 %v612, 7
          %v614 = vsub.s32 %v611, %v613
          %v615 = vrot.slane %v601, %v614
          %v616 = vcombine.low %v517, %v529
          %v617 = vcombine.high %v517, %v529
          %v619 = vunpack.c.l.s4 1983009808
          %v620 = vunpack.c.0.s8 %v619
          %v621 = vlaneseq
          %v622 = vshrl.u32 %v621, 7
          %v623 = vsub.s32 %v620, %v622
          %v624 = vrot.slane %v616, %v623
          %v626 = vunpack.c.l.s4 1983009808
          %v627 = vunpack.c.0.s8 %v626
          %v628 = vlaneseq
          %v629 = vshrl.u32 %v628, 7
          %v630 = vsub.s32 %v627, %v629
          %v631 = vrot.slane %v617, %v630
          %v632 = vcombine.low %v608, %v624
          %v633 = vcombine.high %v608, %v624
          %v635 = vunpack.c.l.s4 1934713408
          %v636 = vunpack.c.0.s8 %v635
          %v637 = vlaneseq
          %v638 = vshrl.u32 %v637, 7
          %v639 = vsub.s32 %v636, %v638
          %v640 = vrot.slane %v632, %v639
          %v642 = vunpack.c.l.s4 1934713408
          %v643 = vunpack.c.0.s8 %v642
          %v644 = vlaneseq
          %v645 = vshrl.u32 %v644, 7
          %v646 = vsub.s32 %v643, %v645
          %v647 = vrot.slane %v633, %v646
          %v648 = vcombine.low %v615, %v631
          %v649 = vcombine.high %v615, %v631
          %v651 = vunpack.c.l.s4 1934713408
          %v652 = vunpack.c.0.s8 %v651
          %v653 = vlaneseq
          %v654 = vshrl.u32 %v653, 7
          %v655 = vsub.s32 %v652, %v654
          %v656 = vrot.slane %v648, %v655
          %v658 = vunpack.c.l.s4 1934713408
          %v659 = vunpack.c.0.s8 %v658
          %v660 = vlaneseq
          %v661 = vshrl.u32 %v660, 7
          %v662 = vsub.s32 %v659, %v661
          %v663 = vrot.slane %v649, %v662
          %v664 = vcombine.high %v640, 0.0
          %v665 = vcombine.high %v647, 0.0
          %v666 = vcombine.high %v656, 0.0
          %v667 = vcombine.high %v663, 0.0
          %v668 = vcombine.low %v572, %v579
          %v670 = vunpack.c.l.s4 1983009808
          %v671 = vunpack.c.0.s8 %v670
          %v672 = vlaneseq
          %v673 = vshrl.u32 %v672, 7
          %v674 = vsub.s32 %v671, %v673
          %v675 = vrot.slane %v668, %v674
          %v676 = vcombine.low %v596, %v597
          %v678 = vunpack.c.l.s4 1983009808
          %v679 = vunpack.c.0.s8 %v678
          %v680 = vlaneseq
          %v681 = vshrl.u32 %v680, 7
          %v682 = vsub.s32 %v679, %v681
          %v683 = vrot.slane %v676, %v682
          %v684 = vcombine.low %v588, %v595
          %v686 = vunpack.c.l.s4 1983009808
          %v687 = vunpack.c.0.s8 %v686
          %v688 = vlaneseq
          %v689 = vshrl.u32 %v688, 7
          %v690 = vsub.s32 %v687, %v689
          %v691 = vrot.slane %v684, %v690
          %v692 = vcombine.low %v598, %v599
          %v694 = vunpack.c.l.s4 1983009808
          %v695 = vunpack.c.0.s8 %v694
          %v696 = vlaneseq
          %v697 = vshrl.u32 %v696, 7
          %v698 = vsub.s32 %v695, %v697
          %v699 = vrot.slane %v692, %v698
          %v700 = vcombine.low %v675, %v683
          %v701 = vcombine.high %v675, %v683
          %v703 = vunpack.c.l.s4 1934713408
          %v704 = vunpack.c.0.s8 %v703
          %v705 = vlaneseq
          %v706 = vshrl.u32 %v705, 7
          %v707 = vsub.s32 %v704, %v706
          %v708 = vrot.slane %v700, %v707
          %v710 = vunpack.c.l.s4 1934713408
          %v711 = vunpack.c.0.s8 %v710
          %v712 = vlaneseq
          %v713 = vshrl.u32 %v712, 7
          %v714 = vsub.s32 %v711, %v713
          %v715 = vrot.slane %v701, %v714
          %v716 = vcombine.low %v691, %v699
          %v717 = vcombine.high %v691, %v699
          %v719 = vunpack.c.l.s4 1934713408
          %v720 = vunpack.c.0.s8 %v719
          %v721 = vlaneseq
          %v722 = vshrl.u32 %v721, 7
          %v723 = vsub.s32 %v720, %v722
          %v724 = vrot.slane %v716, %v723
          %v726 = vunpack.c.l.s4 1934713408
          %v727 = vunpack.c.0.s8 %v726
          %v728 = vlaneseq
          %v729 = vshrl.u32 %v728, 7
          %v730 = vsub.s32 %v727, %v729
          %v731 = vrot.slane %v717, %v730
          %v732 = vcombine.low %v708, %v724
          %v733 = vcombine.high %v708, %v724
          %v734 = vcombine.low %v715, %v731
          %v735 = vcombine.high %v715, %v731
          %v736 = vcombine.low %v640, %v647
          %v738 = vunpack.c.l.s4 1983009808
          %v739 = vunpack.c.0.s8 %v738
          %v740 = vlaneseq
          %v741 = vshrl.u32 %v740, 7
          %v742 = vsub.s32 %v739, %v741
          %v743 = vrot.slane %v736, %v742
          %v744 = vcombine.low %v664, %v665
          %v746 = vunpack.c.l.s4 1983009808
          %v747 = vunpack.c.0.s8 %v746
          %v748 = vlaneseq
          %v749 = vshrl.u32 %v748, 7
          %v750 = vsub.s32 %v747, %v749
          %v751 = vrot.slane %v744, %v750
          %v752 = vcombine.low %v656, %v663
          %v754 = vunpack.c.l.s4 1983009808
          %v755 = vunpack.c.0.s8 %v754
          %v756 = vlaneseq
          %v757 = vshrl.u32 %v756, 7
          %v758 = vsub.s32 %v755, %v757
          %v759 = vrot.slane %v752, %v758
          %v760 = vcombine.low %v666, %v667
          %v762 = vunpack.c.l.s4 1983009808
          %v763 = vunpack.c.0.s8 %v762
          %v764 = vlaneseq
          %v765 = vshrl.u32 %v764, 7
          %v766 = vsub.s32 %v763, %v765
          %v767 = vrot.slane %v760, %v766
          %v768 = vcombine.low %v743, %v751
          %v769 = vcombine.high %v743, %v751
          %v771 = vunpack.c.l.s4 1934713408
          %v772 = vunpack.c.0.s8 %v771
          %v773 = vlaneseq
          %v774 = vshrl.u32 %v773, 7
          %v775 = vsub.s32 %v772, %v774
          %v776 = vrot.slane %v768, %v775
          %v778 = vunpack.c.l.s4 1934713408
          %v779 = vunpack.c.0.s8 %v778
          %v780 = vlaneseq
          %v781 = vshrl.u32 %v780, 7
          %v782 = vsub.s32 %v779, %v781
          %v783 = vrot.slane %v769, %v782
          %v784 = vcombine.low %v759, %v767
          %v785 = vcombine.high %v759, %v767
          %v787 = vunpack.c.l.s4 1934713408
          %v788 = vunpack.c.0.s8 %v787
          %v789 = vlaneseq
          %v790 = vshrl.u32 %v789, 7
          %v791 = vsub.s32 %v788, %v790
          %v792 = vrot.slane %v784, %v791
          %v794 = vunpack.c.l.s4 1934713408
          %v795 = vunpack.c.0.s8 %v794
          %v796 = vlaneseq
          %v797 = vshrl.u32 %v796, 7
          %v798 = vsub.s32 %v795, %v797
          %v799 = vrot.slane %v785, %v798
          %v800 = vcombine.low %v776, %v792
          %v801 = vcombine.high %v776, %v792
          %v802 = vcombine.low %v783, %v799
          %v803 = vcombine.high %v783, %v799
          %vm804 = vcmask 261120
          %805 = vst.msk [vmem:[#allocation3] sm:$0xff] %vm804, %v732
          %806 = vst.msk [vmem:[#allocation3 + $0x8] sm:$0xff] %vm804, %v800
          %807 = vst.msk [vmem:[#allocation3 + $0x10] sm:$0xff] %vm804, %v733
          %808 = vst.msk [vmem:[#allocation3 + $0x18] sm:$0xff] %vm804, %v801
          %809 = vst.msk [vmem:[#allocation3 + $0x20] sm:$0xff] %vm804, %v734
          %810 = vst.msk [vmem:[#allocation3 + $0x28] sm:$0xff] %vm804, %v802
          %811 = vst.msk [vmem:[#allocation3 + $0x30] sm:$0xff] %vm804, %v735
          %812 = vst.msk [vmem:[#allocation3 + $0x38] sm:$0xff] %vm804, %v803
          %815 = vrot.lane.b32.xlu0 %v502, 96
          %v816 = vpop.permute.xlu0 %815
          %817 = vrot.lane.b32.xlu0 %v507, 96
          %v818 = vpop.permute.xlu0 %817
          %821 = vrot.lane.b32.xlu0 %v502, 64
          %v822 = vpop.permute.xlu0 %821
          %823 = vrot.lane.b32.xlu0 %v507, 64
          %v824 = vpop.permute.xlu0 %823
          %827 = vrot.lane.b32.xlu0 %v502, 32
          %v828 = vpop.permute.xlu0 %827
          %829 = vrot.lane.b32.xlu0 %v507, 32
          %v830 = vpop.permute.xlu0 %829
          %v833 = vcombine.low %v502, %v822
          %v834 = vcombine.high %v502, %v822
          %v836 = vunpack.c.l.s4 1983009808
          %v837 = vunpack.c.0.s8 %v836
          %v838 = vlaneseq
          %v839 = vshrl.u32 %v838, 7
          %v840 = vsub.s32 %v837, %v839
          %v841 = vrot.slane %v833, %v840
          %v843 = vunpack.c.l.s4 1983009808
          %v844 = vunpack.c.0.s8 %v843
          %v845 = vlaneseq
          %v846 = vshrl.u32 %v845, 7
          %v847 = vsub.s32 %v844, %v846
          %v848 = vrot.slane %v834, %v847
          %v849 = vcombine.low %v816, %v828
          %v850 = vcombine.high %v816, %v828
          %v852 = vunpack.c.l.s4 1983009808
          %v853 = vunpack.c.0.s8 %v852
          %v854 = vlaneseq
          %v855 = vshrl.u32 %v854, 7
          %v856 = vsub.s32 %v853, %v855
          %v857 = vrot.slane %v849, %v856
          %v859 = vunpack.c.l.s4 1983009808
          %v860 = vunpack.c.0.s8 %v859
          %v861 = vlaneseq
          %v862 = vshrl.u32 %v861, 7
          %v863 = vsub.s32 %v860, %v862
          %v864 = vrot.slane %v850, %v863
          %v865 = vcombine.low %v841, %v857
          %v866 = vcombine.high %v841, %v857
          %v868 = vunpack.c.l.s4 1934713408
          %v869 = vunpack.c.0.s8 %v868
          %v870 = vlaneseq
          %v871 = vshrl.u32 %v870, 7
          %v872 = vsub.s32 %v869, %v871
          %v873 = vrot.slane %v865, %v872
          %v875 = vunpack.c.l.s4 1934713408
          %v876 = vunpack.c.0.s8 %v875
          %v877 = vlaneseq
          %v878 = vshrl.u32 %v877, 7
          %v879 = vsub.s32 %v876, %v878
          %v880 = vrot.slane %v866, %v879
          %v881 = vcombine.low %v848, %v864
          %v882 = vcombine.high %v848, %v864
          %v884 = vunpack.c.l.s4 1934713408
          %v885 = vunpack.c.0.s8 %v884
          %v886 = vlaneseq
          %v887 = vshrl.u32 %v886, 7
          %v888 = vsub.s32 %v885, %v887
          %v889 = vrot.slane %v881, %v888
          %v891 = vunpack.c.l.s4 1934713408
          %v892 = vunpack.c.0.s8 %v891
          %v893 = vlaneseq
          %v894 = vshrl.u32 %v893, 7
          %v895 = vsub.s32 %v892, %v894
          %v896 = vrot.slane %v882, %v895
          %v897 = vcombine.high %v873, 0.0
          %v898 = vcombine.high %v880, 0.0
          %v899 = vcombine.high %v889, 0.0
          %v900 = vcombine.high %v896, 0.0
          %v901 = vcombine.low %v507, %v824
          %v902 = vcombine.high %v507, %v824
          %v904 = vunpack.c.l.s4 1983009808
          %v905 = vunpack.c.0.s8 %v904
          %v906 = vlaneseq
          %v907 = vshrl.u32 %v906, 7
          %v908 = vsub.s32 %v905, %v907
          %v909 = vrot.slane %v901, %v908
          %v911 = vunpack.c.l.s4 1983009808
          %v912 = vunpack.c.0.s8 %v911
          %v913 = vlaneseq
          %v914 = vshrl.u32 %v913, 7
          %v915 = vsub.s32 %v912, %v914
          %v916 = vrot.slane %v902, %v915
          %v917 = vcombine.low %v818, %v830
          %v918 = vcombine.high %v818, %v830
          %v920 = vunpack.c.l.s4 1983009808
          %v921 = vunpack.c.0.s8 %v920
          %v922 = vlaneseq
          %v923 = vshrl.u32 %v922, 7
          %v924 = vsub.s32 %v921, %v923
          %v925 = vrot.slane %v917, %v924
          %v927 = vunpack.c.l.s4 1983009808
          %v928 = vunpack.c.0.s8 %v927
          %v929 = vlaneseq
          %v930 = vshrl.u32 %v929, 7
          %v931 = vsub.s32 %v928, %v930
          %v932 = vrot.slane %v918, %v931
          %v933 = vcombine.low %v909, %v925
          %v934 = vcombine.high %v909, %v925
          %v936 = vunpack.c.l.s4 1934713408
          %v937 = vunpack.c.0.s8 %v936
          %v938 = vlaneseq
          %v939 = vshrl.u32 %v938, 7
          %v940 = vsub.s32 %v937, %v939
          %v941 = vrot.slane %v933, %v940
          %v943 = vunpack.c.l.s4 1934713408
          %v944 = vunpack.c.0.s8 %v943
          %v945 = vlaneseq
          %v946 = vshrl.u32 %v945, 7
          %v947 = vsub.s32 %v944, %v946
          %v948 = vrot.slane %v934, %v947
          %v949 = vcombine.low %v916, %v932
          %v950 = vcombine.high %v916, %v932
          %v952 = vunpack.c.l.s4 1934713408
          %v953 = vunpack.c.0.s8 %v952
          %v954 = vlaneseq
          %v955 = vshrl.u32 %v954, 7
          %v956 = vsub.s32 %v953, %v955
          %v957 = vrot.slane %v949, %v956
          %v959 = vunpack.c.l.s4 1934713408
          %v960 = vunpack.c.0.s8 %v959
          %v961 = vlaneseq
          %v962 = vshrl.u32 %v961, 7
          %v963 = vsub.s32 %v960, %v962
          %v964 = vrot.slane %v950, %v963
          %v965 = vcombine.high %v941, 0.0
          %v966 = vcombine.high %v948, 0.0
          %v967 = vcombine.high %v957, 0.0
          %v968 = vcombine.high %v964, 0.0
          %v969 = vcombine.low %v873, %v880
          %v971 = vunpack.c.l.s4 1983009808
          %v972 = vunpack.c.0.s8 %v971
          %v973 = vlaneseq
          %v974 = vshrl.u32 %v973, 7
          %v975 = vsub.s32 %v972, %v974
          %v976 = vrot.slane %v969, %v975
          %v977 = vcombine.low %v897, %v898
          %v979 = vunpack.c.l.s4 1983009808
          %v980 = vunpack.c.0.s8 %v979
          %v981 = vlaneseq
          %v982 = vshrl.u32 %v981, 7
          %v983 = vsub.s32 %v980, %v982
          %v984 = vrot.slane %v977, %v983
          %v985 = vcombine.low %v889, %v896
          %v987 = vunpack.c.l.s4 1983009808
          %v988 = vunpack.c.0.s8 %v987
          %v989 = vlaneseq
          %v990 = vshrl.u32 %v989, 7
          %v991 = vsub.s32 %v988, %v990
          %v992 = vrot.slane %v985, %v991
          %v993 = vcombine.low %v899, %v900
          %v995 = vunpack.c.l.s4 1983009808
          %v996 = vunpack.c.0.s8 %v995
          %v997 = vlaneseq
          %v998 = vshrl.u32 %v997, 7
          %v999 = vsub.s32 %v996, %v998
          %v1000 = vrot.slane %v993, %v999
          %v1001 = vcombine.low %v976, %v984
          %v1002 = vcombine.high %v976, %v984
          %v1004 = vunpack.c.l.s4 1934713408
          %v1005 = vunpack.c.0.s8 %v1004
          %v1006 = vlaneseq
          %v1007 = vshrl.u32 %v1006, 7
          %v1008 = vsub.s32 %v1005, %v1007
          %v1009 = vrot.slane %v1001, %v1008
          %v1011 = vunpack.c.l.s4 1934713408
          %v1012 = vunpack.c.0.s8 %v1011
          %v1013 = vlaneseq
          %v1014 = vshrl.u32 %v1013, 7
          %v1015 = vsub.s32 %v1012, %v1014
          %v1016 = vrot.slane %v1002, %v1015
          %v1017 = vcombine.low %v992, %v1000
          %v1018 = vcombine.high %v992, %v1000
          %v1020 = vunpack.c.l.s4 1934713408
          %v1021 = vunpack.c.0.s8 %v1020
          %v1022 = vlaneseq
          %v1023 = vshrl.u32 %v1022, 7
          %v1024 = vsub.s32 %v1021, %v1023
          %v1025 = vrot.slane %v1017, %v1024
          %v1027 = vunpack.c.l.s4 1934713408
          %v1028 = vunpack.c.0.s8 %v1027
          %v1029 = vlaneseq
          %v1030 = vshrl.u32 %v1029, 7
          %v1031 = vsub.s32 %v1028, %v1030
          %v1032 = vrot.slane %v1018, %v1031
          %v1033 = vcombine.low %v1009, %v1025
          %v1034 = vcombine.high %v1009, %v1025
          %v1035 = vcombine.low %v1016, %v1032
          %v1036 = vcombine.high %v1016, %v1032
          %v1037 = vcombine.low %v941, %v948
          %v1039 = vunpack.c.l.s4 1983009808
          %v1040 = vunpack.c.0.s8 %v1039
          %v1041 = vlaneseq
          %v1042 = vshrl.u32 %v1041, 7
          %v1043 = vsub.s32 %v1040, %v1042
          %v1044 = vrot.slane %v1037, %v1043
          %v1045 = vcombine.low %v965, %v966
          %v1047 = vunpack.c.l.s4 1983009808
          %v1048 = vunpack.c.0.s8 %v1047
          %v1049 = vlaneseq
          %v1050 = vshrl.u32 %v1049, 7
          %v1051 = vsub.s32 %v1048, %v1050
          %v1052 = vrot.slane %v1045, %v1051
          %v1053 = vcombine.low %v957, %v964
          %v1055 = vunpack.c.l.s4 1983009808
          %v1056 = vunpack.c.0.s8 %v1055
          %v1057 = vlaneseq
          %v1058 = vshrl.u32 %v1057, 7
          %v1059 = vsub.s32 %v1056, %v1058
          %v1060 = vrot.slane %v1053, %v1059
          %v1061 = vcombine.low %v967, %v968
          %v1063 = vunpack.c.l.s4 1983009808
          %v1064 = vunpack.c.0.s8 %v1063
          %v1065 = vlaneseq
          %v1066 = vshrl.u32 %v1065, 7
          %v1067 = vsub.s32 %v1064, %v1066
          %v1068 = vrot.slane %v1061, %v1067
          %v1069 = vcombine.low %v1044, %v1052
          %v1070 = vcombine.high %v1044, %v1052
          %v1072 = vunpack.c.l.s4 1934713408
          %v1073 = vunpack.c.0.s8 %v1072
          %v1074 = vlaneseq
          %v1075 = vshrl.u32 %v1074, 7
          %v1076 = vsub.s32 %v1073, %v1075
          %v1077 = vrot.slane %v1069, %v1076
          %v1079 = vunpack.c.l.s4 1934713408
          %v1080 = vunpack.c.0.s8 %v1079
          %v1081 = vlaneseq
          %v1082 = vshrl.u32 %v1081, 7
          %v1083 = vsub.s32 %v1080, %v1082
          %v1084 = vrot.slane %v1070, %v1083
          %v1085 = vcombine.low %v1060, %v1068
          %v1086 = vcombine.high %v1060, %v1068
          %v1088 = vunpack.c.l.s4 1934713408
          %v1089 = vunpack.c.0.s8 %v1088
          %v1090 = vlaneseq
          %v1091 = vshrl.u32 %v1090, 7
          %v1092 = vsub.s32 %v1089, %v1091
          %v1093 = vrot.slane %v1085, %v1092
          %v1095 = vunpack.c.l.s4 1934713408
          %v1096 = vunpack.c.0.s8 %v1095
          %v1097 = vlaneseq
          %v1098 = vshrl.u32 %v1097, 7
          %v1099 = vsub.s32 %v1096, %v1098
          %v1100 = vrot.slane %v1086, %v1099
          %v1101 = vcombine.low %v1077, %v1093
          %v1102 = vcombine.high %v1077, %v1093
          %v1103 = vcombine.low %v1084, %v1100
          %v1104 = vcombine.high %v1084, %v1100
          %1105 = vst.msk [vmem:[#allocation4] sm:$0xff] %vm804, %v1033
          %1106 = vst.msk [vmem:[#allocation4 + $0x8] sm:$0xff] %vm804, %v1101
          %1107 = vst.msk [vmem:[#allocation4 + $0x10] sm:$0xff] %vm804, %v1034
          %1108 = vst.msk [vmem:[#allocation4 + $0x18] sm:$0xff] %vm804, %v1102
          %1109 = vst.msk [vmem:[#allocation4 + $0x20] sm:$0xff] %vm804, %v1035
          %1110 = vst.msk [vmem:[#allocation4 + $0x28] sm:$0xff] %vm804, %v1103
          %1111 = vst.msk [vmem:[#allocation4 + $0x30] sm:$0xff] %vm804, %v1036
          %1112 = vst.msk [vmem:[#allocation4 + $0x38] sm:$0xff] %vm804, %v1104
        $region56: #{tpu_custom_call.1} parent=39 // pred_fallthru
          _
        %v1113 = vld [vmem:[#allocation2] sm:$0xff]
        %v1114 = vld [vmem:[#allocation2 + $0x8] sm:$0xff]
        %1117 = vrot.lane.b32.xlu0 %v1113, 96
        %v1118 = vpop.permute.xlu0 %1117
        %1119 = vrot.lane.b32.xlu0 %v1114, 96
        %v1120 = vpop.permute.xlu0 %1119
        %1123 = vrot.lane.b32.xlu0 %v1113, 64
        %v1124 = vpop.permute.xlu0 %1123
        %1125 = vrot.lane.b32.xlu0 %v1114, 64
        %v1126 = vpop.permute.xlu0 %1125
        %1129 = vrot.lane.b32.xlu0 %v1113, 32
        %v1130 = vpop.permute.xlu0 %1129
        %1131 = vrot.lane.b32.xlu0 %v1114, 32
        %v1132 = vpop.permute.xlu0 %1131
        %v1135 = vcombine.low %v1113, %v1124
        %v1136 = vcombine.high %v1113, %v1124
        %v1138 = vunpack.c.l.s4 1983009808
        %v1139 = vunpack.c.0.s8 %v1138
        %v1140 = vlaneseq
        %v1141 = vshrl.u32 %v1140, 7
        %v1142 = vsub.s32 %v1139, %v1141
        %v1143 = vrot.slane %v1135, %v1142
        %v1145 = vunpack.c.l.s4 1983009808
        %v1146 = vunpack.c.0.s8 %v1145
        %v1147 = vlaneseq
        %v1148 = vshrl.u32 %v1147, 7
        %v1149 = vsub.s32 %v1146, %v1148
        %v1150 = vrot.slane %v1136, %v1149
        %v1151 = vcombine.low %v1118, %v1130
        %v1152 = vcombine.high %v1118, %v1130
        %v1154 = vunpack.c.l.s4 1983009808
        %v1155 = vunpack.c.0.s8 %v1154
        %v1156 = vlaneseq
        %v1157 = vshrl.u32 %v1156, 7
        %v1158 = vsub.s32 %v1155, %v1157
        %v1159 = vrot.slane %v1151, %v1158
        %v1161 = vunpack.c.l.s4 1983009808
        %v1162 = vunpack.c.0.s8 %v1161
        %v1163 = vlaneseq
        %v1164 = vshrl.u32 %v1163, 7
        %v1165 = vsub.s32 %v1162, %v1164
        %v1166 = vrot.slane %v1152, %v1165
        %v1167 = vcombine.low %v1143, %v1159
        %v1168 = vcombine.high %v1143, %v1159
        %v1170 = vunpack.c.l.s4 1934713408
        %v1171 = vunpack.c.0.s8 %v1170
        %v1172 = vlaneseq
        %v1173 = vshrl.u32 %v1172, 7
        %v1174 = vsub.s32 %v1171, %v1173
        %v1175 = vrot.slane %v1167, %v1174
        %v1177 = vunpack.c.l.s4 1934713408
        %v1178 = vunpack.c.0.s8 %v1177
        %v1179 = vlaneseq
        %v1180 = vshrl.u32 %v1179, 7
        %v1181 = vsub.s32 %v1178, %v1180
        %v1182 = vrot.slane %v1168, %v1181
        %v1183 = vcombine.low %v1150, %v1166
        %v1184 = vcombine.high %v1150, %v1166
        %v1186 = vunpack.c.l.s4 1934713408
        %v1187 = vunpack.c.0.s8 %v1186
        %v1188 = vlaneseq
        %v1189 = vshrl.u32 %v1188, 7
        %v1190 = vsub.s32 %v1187, %v1189
        %v1191 = vrot.slane %v1183, %v1190
        %v1193 = vunpack.c.l.s4 1934713408
        %v1194 = vunpack.c.0.s8 %v1193
        %v1195 = vlaneseq
        %v1196 = vshrl.u32 %v1195, 7
        %v1197 = vsub.s32 %v1194, %v1196
        %v1198 = vrot.slane %v1184, %v1197
        %v1199 = vcombine.high %v1175, 0.0
        %v1200 = vcombine.high %v1182, 0.0
        %v1201 = vcombine.high %v1191, 0.0
        %v1202 = vcombine.high %v1198, 0.0
        %v1203 = vcombine.low %v1114, %v1126
        %v1204 = vcombine.high %v1114, %v1126
        %v1206 = vunpack.c.l.s4 1983009808
        %v1207 = vunpack.c.0.s8 %v1206
        %v1208 = vlaneseq
        %v1209 = vshrl.u32 %v1208, 7
        %v1210 = vsub.s32 %v1207, %v1209
        %v1211 = vrot.slane %v1203, %v1210
        %v1213 = vunpack.c.l.s4 1983009808
        %v1214 = vunpack.c.0.s8 %v1213
        %v1215 = vlaneseq
        %v1216 = vshrl.u32 %v1215, 7
        %v1217 = vsub.s32 %v1214, %v1216
        %v1218 = vrot.slane %v1204, %v1217
        %v1219 = vcombine.low %v1120, %v1132
        %v1220 = vcombine.high %v1120, %v1132
        %v1222 = vunpack.c.l.s4 1983009808
        %v1223 = vunpack.c.0.s8 %v1222
        %v1224 = vlaneseq
        %v1225 = vshrl.u32 %v1224, 7
        %v1226 = vsub.s32 %v1223, %v1225
        %v1227 = vrot.slane %v1219, %v1226
        %v1229 = vunpack.c.l.s4 1983009808
        %v1230 = vunpack.c.0.s8 %v1229
        %v1231 = vlaneseq
        %v1232 = vshrl.u32 %v1231, 7
        %v1233 = vsub.s32 %v1230, %v1232
        %v1234 = vrot.slane %v1220, %v1233
        %v1235 = vcombine.low %v1211, %v1227
        %v1236 = vcombine.high %v1211, %v1227
        %v1238 = vunpack.c.l.s4 1934713408
        %v1239 = vunpack.c.0.s8 %v1238
        %v1240 = vlaneseq
        %v1241 = vshrl.u32 %v1240, 7
        %v1242 = vsub.s32 %v1239, %v1241
        %v1243 = vrot.slane %v1235, %v1242
        %v1245 = vunpack.c.l.s4 1934713408
        %v1246 = vunpack.c.0.s8 %v1245
        %v1247 = vlaneseq
        %v1248 = vshrl.u32 %v1247, 7
        %v1249 = vsub.s32 %v1246, %v1248
        %v1250 = vrot.slane %v1236, %v1249
        %v1251 = vcombine.low %v1218, %v1234
        %v1252 = vcombine.high %v1218, %v1234
        %v1254 = vunpack.c.l.s4 1934713408
        %v1255 = vunpack.c.0.s8 %v1254
        %v1256 = vlaneseq
        %v1257 = vshrl.u32 %v1256, 7
        %v1258 = vsub.s32 %v1255, %v1257
        %v1259 = vrot.slane %v1251, %v1258
        %v1261 = vunpack.c.l.s4 1934713408
        %v1262 = vunpack.c.0.s8 %v1261
        %v1263 = vlaneseq
        %v1264 = vshrl.u32 %v1263, 7
        %v1265 = vsub.s32 %v1262, %v1264
        %v1266 = vrot.slane %v1252, %v1265
        %v1267 = vcombine.high %v1243, 0.0
        %v1268 = vcombine.high %v1250, 0.0
        %v1269 = vcombine.high %v1259, 0.0
        %v1270 = vcombine.high %v1266, 0.0
        %v1271 = vcombine.low %v1175, %v1182
        %v1273 = vunpack.c.l.s4 1983009808
        %v1274 = vunpack.c.0.s8 %v1273
        %v1275 = vlaneseq
        %v1276 = vshrl.u32 %v1275, 7
        %v1277 = vsub.s32 %v1274, %v1276
        %v1278 = vrot.slane %v1271, %v1277
        %v1279 = vcombine.low %v1199, %v1200
        %v1281 = vunpack.c.l.s4 1983009808
        %v1282 = vunpack.c.0.s8 %v1281
        %v1283 = vlaneseq
        %v1284 = vshrl.u32 %v1283, 7
        %v1285 = vsub.s32 %v1282, %v1284
        %v1286 = vrot.slane %v1279, %v1285
        %v1287 = vcombine.low %v1191, %v1198
        %v1289 = vunpack.c.l.s4 1983009808
        %v1290 = vunpack.c.0.s8 %v1289
        %v1291 = vlaneseq
        %v1292 = vshrl.u32 %v1291, 7
        %v1293 = vsub.s32 %v1290, %v1292
        %v1294 = vrot.slane %v1287, %v1293
        %v1295 = vcombine.low %v1201, %v1202
        %v1297 = vunpack.c.l.s4 1983009808
        %v1298 = vunpack.c.0.s8 %v1297
        %v1299 = vlaneseq
        %v1300 = vshrl.u32 %v1299, 7
        %v1301 = vsub.s32 %v1298, %v1300
        %v1302 = vrot.slane %v1295, %v1301
        %v1303 = vcombine.low %v1278, %v1286
        %v1304 = vcombine.high %v1278, %v1286
        %v1306 = vunpack.c.l.s4 1934713408
        %v1307 = vunpack.c.0.s8 %v1306
        %v1308 = vlaneseq
        %v1309 = vshrl.u32 %v1308, 7
        %v1310 = vsub.s32 %v1307, %v1309
        %v1311 = vrot.slane %v1303, %v1310
        %v1313 = vunpack.c.l.s4 1934713408
        %v1314 = vunpack.c.0.s8 %v1313
        %v1315 = vlaneseq
        %v1316 = vshrl.u32 %v1315, 7
        %v1317 = vsub.s32 %v1314, %v1316
        %v1318 = vrot.slane %v1304, %v1317
        %v1319 = vcombine.low %v1294, %v1302
        %v1320 = vcombine.high %v1294, %v1302
        %v1322 = vunpack.c.l.s4 1934713408
        %v1323 = vunpack.c.0.s8 %v1322
        %v1324 = vlaneseq
        %v1325 = vshrl.u32 %v1324, 7
        %v1326 = vsub.s32 %v1323, %v1325
        %v1327 = vrot.slane %v1319, %v1326
        %v1329 = vunpack.c.l.s4 1934713408
        %v1330 = vunpack.c.0.s8 %v1329
        %v1331 = vlaneseq
        %v1332 = vshrl.u32 %v1331, 7
        %v1333 = vsub.s32 %v1330, %v1332
        %v1334 = vrot.slane %v1320, %v1333
        %v1335 = vcombine.low %v1311, %v1327
        %v1336 = vcombine.high %v1311, %v1327
        %v1337 = vcombine.low %v1318, %v1334
        %v1338 = vcombine.high %v1318, %v1334
        %v1339 = vcombine.low %v1243, %v1250
        %v1341 = vunpack.c.l.s4 1983009808
        %v1342 = vunpack.c.0.s8 %v1341
        %v1343 = vlaneseq
        %v1344 = vshrl.u32 %v1343, 7
        %v1345 = vsub.s32 %v1342, %v1344
        %v1346 = vrot.slane %v1339, %v1345
        %v1347 = vcombine.low %v1267, %v1268
        %v1349 = vunpack.c.l.s4 1983009808
        %v1350 = vunpack.c.0.s8 %v1349
        %v1351 = vlaneseq
        %v1352 = vshrl.u32 %v1351, 7
        %v1353 = vsub.s32 %v1350, %v1352
        %v1354 = vrot.slane %v1347, %v1353
        %v1355 = vcombine.low %v1259, %v1266
        %v1357 = vunpack.c.l.s4 1983009808
        %v1358 = vunpack.c.0.s8 %v1357
        %v1359 = vlaneseq
        %v1360 = vshrl.u32 %v1359, 7
        %v1361 = vsub.s32 %v1358, %v1360
        %v1362 = vrot.slane %v1355, %v1361
        %v1363 = vcombine.low %v1269, %v1270
        %v1365 = vunpack.c.l.s4 1983009808
        %v1366 = vunpack.c.0.s8 %v1365
        %v1367 = vlaneseq
        %v1368 = vshrl.u32 %v1367, 7
        %v1369 = vsub.s32 %v1366, %v1368
        %v1370 = vrot.slane %v1363, %v1369
        %v1371 = vcombine.low %v1346, %v1354
        %v1372 = vcombine.high %v1346, %v1354
        %v1374 = vunpack.c.l.s4 1934713408
        %v1375 = vunpack.c.0.s8 %v1374
        %v1376 = vlaneseq
        %v1377 = vshrl.u32 %v1376, 7
        %v1378 = vsub.s32 %v1375, %v1377
        %v1379 = vrot.slane %v1371, %v1378
        %v1381 = vunpack.c.l.s4 1934713408
        %v1382 = vunpack.c.0.s8 %v1381
        %v1383 = vlaneseq
        %v1384 = vshrl.u32 %v1383, 7
        %v1385 = vsub.s32 %v1382, %v1384
        %v1386 = vrot.slane %v1372, %v1385
        %v1387 = vcombine.low %v1362, %v1370
        %v1388 = vcombine.high %v1362, %v1370
        %v1390 = vunpack.c.l.s4 1934713408
        %v1391 = vunpack.c.0.s8 %v1390
        %v1392 = vlaneseq
        %v1393 = vshrl.u32 %v1392, 7
        %v1394 = vsub.s32 %v1391, %v1393
        %v1395 = vrot.slane %v1387, %v1394
        %v1397 = vunpack.c.l.s4 1934713408
        %v1398 = vunpack.c.0.s8 %v1397
        %v1399 = vlaneseq
        %v1400 = vshrl.u32 %v1399, 7
        %v1401 = vsub.s32 %v1398, %v1400
        %v1402 = vrot.slane %v1388, %v1401
        %v1403 = vcombine.low %v1379, %v1395
        %v1404 = vcombine.high %v1379, %v1395
        %v1405 = vcombine.low %v1386, %v1402
        %v1406 = vcombine.high %v1386, %v1402
        %v1407 = vld [vmem:[#allocation3] sm:$0xff]
        %v1408 = vld [vmem:[#allocation3 + $0x8] sm:$0xff]
        %v1409 = vld [vmem:[#allocation3 + $0x10] sm:$0xff]
        %v1410 = vld [vmem:[#allocation3 + $0x18] sm:$0xff]
        %v1411 = vld [vmem:[#allocation3 + $0x20] sm:$0xff]
        %v1412 = vld [vmem:[#allocation3 + $0x28] sm:$0xff]
        %v1413 = vld [vmem:[#allocation3 + $0x30] sm:$0xff]
        %v1414 = vld [vmem:[#allocation3 + $0x38] sm:$0xff]
        %vm1415 = vcmask 261120
        %v1417 = vsel %vm1415, %v1335, 0
        %v1420 = vsel %vm1415, %v1403, 0
        %v1423 = vsel %vm1415, %v1407, 0
        %v1426 = vsel %vm1415, %v1408, 0
        %1428 = vmatprep.subr.mxu0 0.0
        %1429 = vmatpush1.xpose.msra.mxu0 %v1423
        %1430 = vmatprep.subr.mxu0 0.0
        %1431 = vmatpush1.xpose.msra.mxu0 %v1426
        %1432 = vmatprep.subr.mxu0 0.0
        %1433 = vmatpush1.xpose.msra.mxu0 0.0
        %1434 = vmatprep.subr.mxu0 0.0
        %1435 = vmatpush1.xpose.msra.mxu0 0.0
        %1436 = vmatprep.subr.mxu0 0.0
        %1437 = vmatpush1.xpose.msra.mxu0 0.0
        %1438 = vmatprep.subr.mxu0 0.0
        %1439 = vmatpush1.xpose.msra.mxu0 0.0
        %1440 = vmatprep.subr.mxu0 0.0
        %1441 = vmatpush1.xpose.msra.mxu0 0.0
        %1442 = vmatprep.subr.mxu0 0.0
        %1443 = vmatpush1.xpose.msra.mxu0 0.0
        %1444 = vmatprep.subr.mxu0 0.0
        %1445 = vmatpush1.xpose.msra.mxu0 0.0
        %1446 = vmatprep.subr.mxu0 0.0
        %1447 = vmatpush1.xpose.msra.mxu0 0.0
        %1448 = vmatprep.subr.mxu0 0.0
        %1449 = vmatpush1.xpose.msra.mxu0 0.0
        %1450 = vmatprep.subr.mxu0 0.0
        %1451 = vmatpush1.xpose.msra.mxu0 0.0
        %1452 = vmatprep.subr.mxu0 0.0
        %1453 = vmatpush1.xpose.msra.mxu0 0.0
        %1454 = vmatprep.subr.mxu0 0.0
        %1455 = vmatpush1.xpose.msra.mxu0 0.0
        %1456 = vmatprep.subr.mxu0 0.0
        %1457 = vmatpush1.xpose.msra.mxu0 0.0
        %1458 = vmatprep.subr.mxu0 0.0
        %1459 = vmatpush1.xpose.msra.mxu0 0.0
        %1460 = vmatprep.subr.mxu0 0.0
        %1461 = vmatpush1.xpose.msra.mxu0 0.0
        %1462 = vmatprep.subr.mxu0 0.0
        %1463 = vmatpush1.xpose.msra.mxu0 0.0
        %1464 = vmatprep.subr.mxu0 0.0
        %1465 = vmatpush1.xpose.msra.mxu0 0.0
        %1466 = vmatprep.subr.mxu0 0.0
        %1467 = vmatpush1.xpose.msra.mxu0 0.0
        %1468 = vmatprep.subr.mxu0 0.0
        %1469 = vmatpush1.xpose.msra.mxu0 0.0
        %1470 = vmatprep.subr.mxu0 0.0
        %1471 = vmatpush1.xpose.msra.mxu0 0.0
        %1472 = vmatprep.subr.mxu0 0.0
        %1473 = vmatpush1.xpose.msra.mxu0 0.0
        %1474 = vmatprep.subr.mxu0 0.0
        %1475 = vmatpush1.xpose.msra.mxu0 0.0
        %1476 = vmatprep.subr.mxu0 0.0
        %1477 = vmatpush1.xpose.msra.mxu0 0.0
        %1478 = vmatprep.subr.mxu0 0.0
        %1479 = vmatpush1.xpose.msra.mxu0 0.0
        %1480 = vmatprep.subr.mxu0 0.0
        %1481 = vmatpush1.xpose.msra.mxu0 0.0
        %1482 = vmatprep.subr.mxu0 0.0
        %1483 = vmatpush1.xpose.msra.mxu0 0.0
        %1484 = vmatprep.subr.mxu0 0.0
        %1485 = vmatpush1.xpose.msra.mxu0 0.0
        %1486 = vmatprep.subr.mxu0 0.0
        %1487 = vmatpush1.xpose.msra.mxu0 0.0
        %1488 = vmatprep.subr.mxu0 0.0
        %1489 = vmatpush1.xpose.msra.mxu0 0.0
        %1490 = vmatprep.subr.mxu0 0.0
        %1491 = vmatpush1.xpose.msra.mxu0 0.0
        %1492 = vmatprep.mubr.f32.mxu0 0.0
        %1493 = vmatmul.mubr.f32.gmra.mrb[0].mxu0 %v1417
        %v1494 = vpop.f32.mrb[0].mxu0
        %v1495 = vadd.f32 0.0, %v1494
        %v1496 = vpop.f32.mrb[0].mxu0
        %1497 = vmatprep.mubr.f32.mxu0 0.0
        %1498 = vmatmul.mubr.f32.gmra.mrb[0].mxu0 %v1420
        %v1499 = vpop.f32.mrb[0].mxu0
        %v1500 = vadd.f32 0.0, %v1499
        %v1501 = vpop.f32.mrb[0].mxu0
        %1502 = vdwg.mxu0
        %v1504 = vsel %vm1415, %v1336, 0
        %v1507 = vsel %vm1415, %v1404, 0
        %v1510 = vsel %vm1415, %v1409, 0
        %v1513 = vsel %vm1415, %v1410, 0
        %1515 = vmatprep.subr.mxu0 0.0
        %1516 = vmatpush1.xpose.msra.mxu0 %v1510
        %1517 = vmatprep.subr.mxu0 0.0
        %1518 = vmatpush1.xpose.msra.mxu0 %v1513
        %1519 = vmatprep.subr.mxu0 0.0
        %1520 = vmatpush1.xpose.msra.mxu0 0.0
        %1521 = vmatprep.subr.mxu0 0.0
        %1522 = vmatpush1.xpose.msra.mxu0 0.0
        %1523 = vmatprep.subr.mxu0 0.0
        %1524 = vmatpush1.xpose.msra.mxu0 0.0
        %1525 = vmatprep.subr.mxu0 0.0
        %1526 = vmatpush1.xpose.msra.mxu0 0.0
        %1527 = vmatprep.subr.mxu0 0.0
        %1528 = vmatpush1.xpose.msra.mxu0 0.0
        %1529 = vmatprep.subr.mxu0 0.0
        %1530 = vmatpush1.xpose.msra.mxu0 0.0
        %1531 = vmatprep.subr.mxu0 0.0
        %1532 = vmatpush1.xpose.msra.mxu0 0.0
        %1533 = vmatprep.subr.mxu0 0.0
        %1534 = vmatpush1.xpose.msra.mxu0 0.0
        %1535 = vmatprep.subr.mxu0 0.0
        %1536 = vmatpush1.xpose.msra.mxu0 0.0
        %1537 = vmatprep.subr.mxu0 0.0
        %1538 = vmatpush1.xpose.msra.mxu0 0.0
        %1539 = vmatprep.subr.mxu0 0.0
        %1540 = vmatpush1.xpose.msra.mxu0 0.0
        %1541 = vmatprep.subr.mxu0 0.0
        %1542 = vmatpush1.xpose.msra.mxu0 0.0
        %1543 = vmatprep.subr.mxu0 0.0
        %1544 = vmatpush1.xpose.msra.mxu0 0.0
        %1545 = vmatprep.subr.mxu0 0.0
        %1546 = vmatpush1.xpose.msra.mxu0 0.0
        %1547 = vmatprep.subr.mxu0 0.0
        %1548 = vmatpush1.xpose.msra.mxu0 0.0
        %1549 = vmatprep.subr.mxu0 0.0
        %1550 = vmatpush1.xpose.msra.mxu0 0.0
        %1551 = vmatprep.subr.mxu0 0.0
        %1552 = vmatpush1.xpose.msra.mxu0 0.0
        %1553 = vmatprep.subr.mxu0 0.0
        %1554 = vmatpush1.xpose.msra.mxu0 0.0
        %1555 = vmatprep.subr.mxu0 0.0
        %1556 = vmatpush1.xpose.msra.mxu0 0.0
        %1557 = vmatprep.subr.mxu0 0.0
        %1558 = vmatpush1.xpose.msra.mxu0 0.0
        %1559 = vmatprep.subr.mxu0 0.0
        %1560 = vmatpush1.xpose.msra.mxu0 0.0
        %1561 = vmatprep.subr.mxu0 0.0
        %1562 = vmatpush1.xpose.msra.mxu0 0.0
        %1563 = vmatprep.subr.mxu0 0.0
        %1564 = vmatpush1.xpose.msra.mxu0 0.0
        %1565 = vmatprep.subr.mxu0 0.0
        %1566 = vmatpush1.xpose.msra.mxu0 0.0
        %1567 = vmatprep.subr.mxu0 0.0
        %1568 = vmatpush1.xpose.msra.mxu0 0.0
        %1569 = vmatprep.subr.mxu0 0.0
        %1570 = vmatpush1.xpose.msra.mxu0 0.0
        %1571 = vmatprep.subr.mxu0 0.0
        %1572 = vmatpush1.xpose.msra.mxu0 0.0
        %1573 = vmatprep.subr.mxu0 0.0
        %1574 = vmatpush1.xpose.msra.mxu0 0.0
        %1575 = vmatprep.subr.mxu0 0.0
        %1576 = vmatpush1.xpose.msra.mxu0 0.0
        %1577 = vmatprep.subr.mxu0 0.0
        %1578 = vmatpush1.xpose.msra.mxu0 0.0
        %1579 = vmatprep.mubr.f32.mxu0 0.0
        %1580 = vmatmul.mubr.f32.gmra.mrb[0].mxu0 %v1504
        %v1581 = vpop.f32.mrb[0].mxu0
        %v1582 = vadd.f32 0.0, %v1581
        %v1583 = vpop.f32.mrb[0].mxu0
        %1584 = vmatprep.mubr.f32.mxu0 0.0
        %1585 = vmatmul.mubr.f32.gmra.mrb[0].mxu0 %v1507
        %v1586 = vpop.f32.mrb[0].mxu0
        %v1587 = vadd.f32 0.0, %v1586
        %v1588 = vpop.f32.mrb[0].mxu0
        %1589 = vdwg.mxu0
        %v1591 = vsel %vm1415, %v1337, 0
        %v1594 = vsel %vm1415, %v1405, 0
        %v1597 = vsel %vm1415, %v1411, 0
        %v1600 = vsel %vm1415, %v1412, 0
        %1602 = vmatprep.subr.mxu0 0.0
        %1603 = vmatpush1.xpose.msra.mxu0 %v1597
        %1604 = vmatprep.subr.mxu0 0.0
        %1605 = vmatpush1.xpose.msra.mxu0 %v1600
        %1606 = vmatprep.subr.mxu0 0.0
        %1607 = vmatpush1.xpose.msra.mxu0 0.0
        %1608 = vmatprep.subr.mxu0 0.0
        %1609 = vmatpush1.xpose.msra.mxu0 0.0
        %1610 = vmatprep.subr.mxu0 0.0
        %1611 = vmatpush1.xpose.msra.mxu0 0.0
        %1612 = vmatprep.subr.mxu0 0.0
        %1613 = vmatpush1.xpose.msra.mxu0 0.0
        %1614 = vmatprep.subr.mxu0 0.0
        %1615 = vmatpush1.xpose.msra.mxu0 0.0
        %1616 = vmatprep.subr.mxu0 0.0
        %1617 = vmatpush1.xpose.msra.mxu0 0.0
        %1618 = vmatprep.subr.mxu0 0.0
        %1619 = vmatpush1.xpose.msra.mxu0 0.0
        %1620 = vmatprep.subr.mxu0 0.0
        %1621 = vmatpush1.xpose.msra.mxu0 0.0
        %1622 = vmatprep.subr.mxu0 0.0
        %1623 = vmatpush1.xpose.msra.mxu0 0.0
        %1624 = vmatprep.subr.mxu0 0.0
        %1625 = vmatpush1.xpose.msra.mxu0 0.0
        %1626 = vmatprep.subr.mxu0 0.0
        %1627 = vmatpush1.xpose.msra.mxu0 0.0
        %1628 = vmatprep.subr.mxu0 0.0
        %1629 = vmatpush1.xpose.msra.mxu0 0.0
        %1630 = vmatprep.subr.mxu0 0.0
        %1631 = vmatpush1.xpose.msra.mxu0 0.0
        %1632 = vmatprep.subr.mxu0 0.0
        %1633 = vmatpush1.xpose.msra.mxu0 0.0
        %1634 = vmatprep.subr.mxu0 0.0
        %1635 = vmatpush1.xpose.msra.mxu0 0.0
        %1636 = vmatprep.subr.mxu0 0.0
        %1637 = vmatpush1.xpose.msra.mxu0 0.0
        %1638 = vmatprep.subr.mxu0 0.0
        %1639 = vmatpush1.xpose.msra.mxu0 0.0
        %1640 = vmatprep.subr.mxu0 0.0
        %1641 = vmatpush1.xpose.msra.mxu0 0.0
        %1642 = vmatprep.subr.mxu0 0.0
        %1643 = vmatpush1.xpose.msra.mxu0 0.0
        %1644 = vmatprep.subr.mxu0 0.0
        %1645 = vmatpush1.xpose.msra.mxu0 0.0
        %1646 = vmatprep.subr.mxu0 0.0
        %1647 = vmatpush1.xpose.msra.mxu0 0.0
        %1648 = vmatprep.subr.mxu0 0.0
        %1649 = vmatpush1.xpose.msra.mxu0 0.0
        %1650 = vmatprep.subr.mxu0 0.0
        %1651 = vmatpush1.xpose.msra.mxu0 0.0
        %1652 = vmatprep.subr.mxu0 0.0
        %1653 = vmatpush1.xpose.msra.mxu0 0.0
        %1654 = vmatprep.subr.mxu0 0.0
        %1655 = vmatpush1.xpose.msra.mxu0 0.0
        %1656 = vmatprep.subr.mxu0 0.0
        %1657 = vmatpush1.xpose.msra.mxu0 0.0
        %1658 = vmatprep.subr.mxu0 0.0
        %1659 = vmatpush1.xpose.msra.mxu0 0.0
        %1660 = vmatprep.subr.mxu0 0.0
        %1661 = vmatpush1.xpose.msra.mxu0 0.0
        %1662 = vmatprep.subr.mxu0 0.0
        %1663 = vmatpush1.xpose.msra.mxu0 0.0
        %1664 = vmatprep.subr.mxu0 0.0
        %1665 = vmatpush1.xpose.msra.mxu0 0.0
        %1666 = vmatprep.mubr.f32.mxu0 0.0
        %1667 = vmatmul.mubr.f32.gmra.mrb[0].mxu0 %v1591
        %v1668 = vpop.f32.mrb[0].mxu0
        %v1669 = vadd.f32 0.0, %v1668
        %v1670 = vpop.f32.mrb[0].mxu0
        %1671 = vmatprep.mubr.f32.mxu0 0.0
        %1672 = vmatmul.mubr.f32.gmra.mrb[0].mxu0 %v1594
        %v1673 = vpop.f32.mrb[0].mxu0
        %v1674 = vadd.f32 0.0, %v1673
        %v1675 = vpop.f32.mrb[0].mxu0
        %1676 = vdwg.mxu0
        %v1678 = vsel %vm1415, %v1338, 0
        %v1681 = vsel %vm1415, %v1406, 0
        %v1684 = vsel %vm1415, %v1413, 0
        %v1687 = vsel %vm1415, %v1414, 0
        %1689 = vmatprep.subr.mxu0 0.0
        %1690 = vmatpush1.xpose.msra.mxu0 %v1684
        %1691 = vmatprep.subr.mxu0 0.0
        %1692 = vmatpush1.xpose.msra.mxu0 %v1687
        %1693 = vmatprep.subr.mxu0 0.0
        %1694 = vmatpush1.xpose.msra.mxu0 0.0
        %1695 = vmatprep.subr.mxu0 0.0
        %1696 = vmatpush1.xpose.msra.mxu0 0.0
        %1697 = vmatprep.subr.mxu0 0.0
        %1698 = vmatpush1.xpose.msra.mxu0 0.0
        %1699 = vmatprep.subr.mxu0 0.0
        %1700 = vmatpush1.xpose.msra.mxu0 0.0
        %1701 = vmatprep.subr.mxu0 0.0
        %1702 = vmatpush1.xpose.msra.mxu0 0.0
        %1703 = vmatprep.subr.mxu0 0.0
        %1704 = vmatpush1.xpose.msra.mxu0 0.0
        %1705 = vmatprep.subr.mxu0 0.0
        %1706 = vmatpush1.xpose.msra.mxu0 0.0
        %1707 = vmatprep.subr.mxu0 0.0
        %1708 = vmatpush1.xpose.msra.mxu0 0.0
        %1709 = vmatprep.subr.mxu0 0.0
        %1710 = vmatpush1.xpose.msra.mxu0 0.0
        %1711 = vmatprep.subr.mxu0 0.0
        %1712 = vmatpush1.xpose.msra.mxu0 0.0
        %1713 = vmatprep.subr.mxu0 0.0
        %1714 = vmatpush1.xpose.msra.mxu0 0.0
        %1715 = vmatprep.subr.mxu0 0.0
        %1716 = vmatpush1.xpose.msra.mxu0 0.0
        %1717 = vmatprep.subr.mxu0 0.0
        %1718 = vmatpush1.xpose.msra.mxu0 0.0
        %1719 = vmatprep.subr.mxu0 0.0
        %1720 = vmatpush1.xpose.msra.mxu0 0.0
        %1721 = vmatprep.subr.mxu0 0.0
        %1722 = vmatpush1.xpose.msra.mxu0 0.0
        %1723 = vmatprep.subr.mxu0 0.0
        %1724 = vmatpush1.xpose.msra.mxu0 0.0
        %1725 = vmatprep.subr.mxu0 0.0
        %1726 = vmatpush1.xpose.msra.mxu0 0.0
        %1727 = vmatprep.subr.mxu0 0.0
        %1728 = vmatpush1.xpose.msra.mxu0 0.0
        %1729 = vmatprep.subr.mxu0 0.0
        %1730 = vmatpush1.xpose.msra.mxu0 0.0
        %1731 = vmatprep.subr.mxu0 0.0
        %1732 = vmatpush1.xpose.msra.mxu0 0.0
        %1733 = vmatprep.subr.mxu0 0.0
        %1734 = vmatpush1.xpose.msra.mxu0 0.0
        %1735 = vmatprep.subr.mxu0 0.0
        %1736 = vmatpush1.xpose.msra.mxu0 0.0
        %1737 = vmatprep.subr.mxu0 0.0
        %1738 = vmatpush1.xpose.msra.mxu0 0.0
        %1739 = vmatprep.subr.mxu0 0.0
        %1740 = vmatpush1.xpose.msra.mxu0 0.0
        %1741 = vmatprep.subr.mxu0 0.0
        %1742 = vmatpush1.xpose.msra.mxu0 0.0
        %1743 = vmatprep.subr.mxu0 0.0
        %1744 = vmatpush1.xpose.msra.mxu0 0.0
        %1745 = vmatprep.subr.mxu0 0.0
        %1746 = vmatpush1.xpose.msra.mxu0 0.0
        %1747 = vmatprep.subr.mxu0 0.0
        %1748 = vmatpush1.xpose.msra.mxu0 0.0
        %1749 = vmatprep.subr.mxu0 0.0
        %1750 = vmatpush1.xpose.msra.mxu0 0.0
        %1751 = vmatprep.subr.mxu0 0.0
        %1752 = vmatpush1.xpose.msra.mxu0 0.0
        %1753 = vmatprep.mubr.f32.mxu0 0.0
        %1754 = vmatmul.mubr.f32.gmra.mrb[0].mxu0 %v1678
        %v1755 = vpop.f32.mrb[0].mxu0
        %v1756 = vadd.f32 0.0, %v1755
        %v1757 = vpop.f32.mrb[0].mxu0
        %1758 = vmatprep.mubr.f32.mxu0 0.0
        %1759 = vmatmul.mubr.f32.gmra.mrb[0].mxu0 %v1681
        %v1760 = vpop.f32.mrb[0].mxu0
        %v1761 = vadd.f32 0.0, %v1760
        %v1762 = vpop.f32.mrb[0].mxu0
        %1763 = vdwg.mxu0
        %vm1764 = vcmask 130048
        %v1765 = vsel %vm1764, %v1495, -inf
        %1766 = vmax.xlane.f32.xlu0 %v1765
        %v1767 = vpop.xlane.xlu0 %1766
        %v1768 = vsel %vm1764, %v1500, -inf
        %1769 = vmax.xlane.f32.xlu0 %v1768
        %v1770 = vpop.xlane.xlu0 %1769
        %v1771 = vsel %vm1764, %v1582, -inf
        %1772 = vmax.xlane.f32.xlu0 %v1771
        %v1773 = vpop.xlane.xlu0 %1772
        %v1774 = vsel %vm1764, %v1587, -inf
        %1775 = vmax.xlane.f32.xlu0 %v1774
        %v1776 = vpop.xlane.xlu0 %1775
        %v1777 = vsel %vm1764, %v1669, -inf
        %1778 = vmax.xlane.f32.xlu0 %v1777
        %v1779 = vpop.xlane.xlu0 %1778
        %v1780 = vsel %vm1764, %v1674, -inf
        %1781 = vmax.xlane.f32.xlu0 %v1780
        %v1782 = vpop.xlane.xlu0 %1781
        %v1783 = vsel %vm1764, %v1756, -inf
        %1784 = vmax.xlane.f32.xlu0 %v1783
        %v1785 = vpop.xlane.xlu0 %1784
        %v1786 = vsel %vm1764, %v1761, -inf
        %1787 = vmax.xlane.f32.xlu0 %v1786
        %v1788 = vpop.xlane.xlu0 %1787
        %v1789 = vsub.f32 %v1495, %v1767
        %v1790 = vsub.f32 %v1500, %v1770
        %v1791 = vsub.f32 %v1582, %v1773
        %v1792 = vsub.f32 %v1587, %v1776
        %v1793 = vsub.f32 %v1669, %v1779
        %v1794 = vsub.f32 %v1674, %v1782
        %v1795 = vsub.f32 %v1756, %v1785
        %v1796 = vsub.f32 %v1761, %v1788
        %v1797 = vmul.f32 %v1789, 1.442695
        %v1798 = vpow.pop %v1797
        %v1799 = vmul.f32 %v1790, 1.442695
        %v1800 = vpow.pop %v1799
        %v1801 = vmul.f32 %v1791, 1.442695
        %v1802 = vpow.pop %v1801
        %v1803 = vmul.f32 %v1792, 1.442695
        %v1804 = vpow.pop %v1803
        %v1805 = vmul.f32 %v1793, 1.442695
        %v1806 = vpow.pop %v1805
        %v1807 = vmul.f32 %v1794, 1.442695
        %v1808 = vpow.pop %v1807
        %v1809 = vmul.f32 %v1795, 1.442695
        %v1810 = vpow.pop %v1809
        %v1811 = vmul.f32 %v1796, 1.442695
        %v1812 = vpow.pop %v1811
        %v1813 = vsel %vm1764, %v1798, 0.0
        %1814 = vadd.xlane.f32.xlu0 %v1813
        %v1815 = vpop.xlane.xlu0 %1814
        %v1816 = vsel %vm1764, %v1800, 0.0
        %1817 = vadd.xlane.f32.xlu0 %v1816
        %v1818 = vpop.xlane.xlu0 %1817
        %v1819 = vsel %vm1764, %v1802, 0.0
        %1820 = vadd.xlane.f32.xlu0 %v1819
        %v1821 = vpop.xlane.xlu0 %1820
        %v1822 = vsel %vm1764, %v1804, 0.0
        %1823 = vadd.xlane.f32.xlu0 %v1822
        %v1824 = vpop.xlane.xlu0 %1823
        %v1825 = vsel %vm1764, %v1806, 0.0
        %1826 = vadd.xlane.f32.xlu0 %v1825
        %v1827 = vpop.xlane.xlu0 %1826
        %v1828 = vsel %vm1764, %v1808, 0.0
        %1829 = vadd.xlane.f32.xlu0 %v1828
        %v1830 = vpop.xlane.xlu0 %1829
        %v1831 = vsel %vm1764, %v1810, 0.0
        %1832 = vadd.xlane.f32.xlu0 %v1831
        %v1833 = vpop.xlane.xlu0 %1832
        %v1834 = vsel %vm1764, %v1812, 0.0
        %1835 = vadd.xlane.f32.xlu0 %v1834
        %v1836 = vpop.xlane.xlu0 %1835
        %v1837 = vld [vmem:[#allocation4] sm:$0xff]
        %v1838 = vld [vmem:[#allocation4 + $0x8] sm:$0xff]
        %v1839 = vld [vmem:[#allocation4 + $0x10] sm:$0xff]
        %v1840 = vld [vmem:[#allocation4 + $0x18] sm:$0xff]
        %v1841 = vld [vmem:[#allocation4 + $0x20] sm:$0xff]
        %v1842 = vld [vmem:[#allocation4 + $0x28] sm:$0xff]
        %v1843 = vld [vmem:[#allocation4 + $0x30] sm:$0xff]
        %v1844 = vld [vmem:[#allocation4 + $0x38] sm:$0xff]
        %v1846 = vsel %vm1764, %v1798, 0
        %v1849 = vsel %vm1764, %v1800, 0
        %1851 = vmatprep.subr.mxu0 0.0
        %1852 = vmatpush1.msra.mxu0 %v1837
        %1853 = vmatprep.subr.mxu0 0.0
        %1854 = vmatpush1.msra.mxu0 %v1838
        %1855 = vmatprep.subr.mxu0 0.0
        %1856 = vmatpush1.msra.mxu0 0.0
        %1857 = vmatprep.subr.mxu0 0.0
        %1858 = vmatpush1.msra.mxu0 0.0
        %1859 = vmatprep.subr.mxu0 0.0
        %1860 = vmatpush1.msra.mxu0 0.0
        %1861 = vmatprep.subr.mxu0 0.0
        %1862 = vmatpush1.msra.mxu0 0.0
        %1863 = vmatprep.subr.mxu0 0.0
        %1864 = vmatpush1.msra.mxu0 0.0
        %1865 = vmatprep.subr.mxu0 0.0
        %1866 = vmatpush1.msra.mxu0 0.0
        %1867 = vmatprep.subr.mxu0 0.0
        %1868 = vmatpush1.msra.mxu0 0.0
        %1869 = vmatprep.subr.mxu0 0.0
        %1870 = vmatpush1.msra.mxu0 0.0
        %1871 = vmatprep.subr.mxu0 0.0
        %1872 = vmatpush1.msra.mxu0 0.0
        %1873 = vmatprep.subr.mxu0 0.0
        %1874 = vmatpush1.msra.mxu0 0.0
        %1875 = vmatprep.subr.mxu0 0.0
        %1876 = vmatpush1.msra.mxu0 0.0
        %1877 = vmatprep.subr.mxu0 0.0
        %1878 = vmatpush1.msra.mxu0 0.0
        %1879 = vmatprep.subr.mxu0 0.0
        %1880 = vmatpush1.msra.mxu0 0.0
        %1881 = vmatprep.subr.mxu0 0.0
        %1882 = vmatpush1.msra.mxu0 0.0
        %1883 = vmatprep.subr.mxu0 0.0
        %1884 = vmatpush1.msra.mxu0 0.0
        %1885 = vmatprep.subr.mxu0 0.0
        %1886 = vmatpush1.msra.mxu0 0.0
        %1887 = vmatprep.subr.mxu0 0.0
        %1888 = vmatpush1.msra.mxu0 0.0
        %1889 = vmatprep.subr.mxu0 0.0
        %1890 = vmatpush1.msra.mxu0 0.0
        %1891 = vmatprep.subr.mxu0 0.0
        %1892 = vmatpush1.msra.mxu0 0.0
        %1893 = vmatprep.subr.mxu0 0.0
        %1894 = vmatpush1.msra.mxu0 0.0
        %1895 = vmatprep.subr.mxu0 0.0
        %1896 = vmatpush1.msra.mxu0 0.0
        %1897 = vmatprep.subr.mxu0 0.0
        %1898 = vmatpush1.msra.mxu0 0.0
        %1899 = vmatprep.subr.mxu0 0.0
        %1900 = vmatpush1.msra.mxu0 0.0
        %1901 = vmatprep.subr.mxu0 0.0
        %1902 = vmatpush1.msra.mxu0 0.0
        %1903 = vmatprep.subr.mxu0 0.0
        %1904 = vmatpush1.msra.mxu0 0.0
        %1905 = vmatprep.subr.mxu0 0.0
        %1906 = vmatpush1.msra.mxu0 0.0
        %1907 = vmatprep.subr.mxu0 0.0
        %1908 = vmatpush1.msra.mxu0 0.0
        %1909 = vmatprep.subr.mxu0 0.0
        %1910 = vmatpush1.msra.mxu0 0.0
        %1911 = vmatprep.subr.mxu0 0.0
        %1912 = vmatpush1.msra.mxu0 0.0
        %1913 = vmatprep.subr.mxu0 0.0
        %1914 = vmatpush1.msra.mxu0 0.0
        %1915 = vmatprep.mubr.f32.mxu0 0.0
        %1916 = vmatmul.mubr.f32.gmra.mrb[0].mxu0 %v1846
        %v1917 = vpop.f32.mrb[0].mxu0
        %v1918 = vadd.f32 0.0, %v1917
        %v1919 = vpop.f32.mrb[0].mxu0
        %1920 = vmatprep.mubr.f32.mxu0 0.0
        %1921 = vmatmul.mubr.f32.gmra.mrb[0].mxu0 %v1849
        %v1922 = vpop.f32.mrb[0].mxu0
        %v1923 = vadd.f32 0.0, %v1922
        %v1924 = vpop.f32.mrb[0].mxu0
        %1925 = vdwg.mxu0
        %v1927 = vsel %vm1764, %v1802, 0
        %v1930 = vsel %vm1764, %v1804, 0
        %1932 = vmatprep.subr.mxu0 0.0
        %1933 = vmatpush1.msra.mxu0 %v1839
        %1934 = vmatprep.subr.mxu0 0.0
        %1935 = vmatpush1.msra.mxu0 %v1840
        %1936 = vmatprep.subr.mxu0 0.0
        %1937 = vmatpush1.msra.mxu0 0.0
        %1938 = vmatprep.subr.mxu0 0.0
        %1939 = vmatpush1.msra.mxu0 0.0
        %1940 = vmatprep.subr.mxu0 0.0
        %1941 = vmatpush1.msra.mxu0 0.0
        %1942 = vmatprep.subr.mxu0 0.0
        %1943 = vmatpush1.msra.mxu0 0.0
        %1944 = vmatprep.subr.mxu0 0.0
        %1945 = vmatpush1.msra.mxu0 0.0
        %1946 = vmatprep.subr.mxu0 0.0
        %1947 = vmatpush1.msra.mxu0 0.0
        %1948 = vmatprep.subr.mxu0 0.0
        %1949 = vmatpush1.msra.mxu0 0.0
        %1950 = vmatprep.subr.mxu0 0.0
        %1951 = vmatpush1.msra.mxu0 0.0
        %1952 = vmatprep.subr.mxu0 0.0
        %1953 = vmatpush1.msra.mxu0 0.0
        %1954 = vmatprep.subr.mxu0 0.0
        %1955 = vmatpush1.msra.mxu0 0.0
        %1956 = vmatprep.subr.mxu0 0.0
        %1957 = vmatpush1.msra.mxu0 0.0
        %1958 = vmatprep.subr.mxu0 0.0
        %1959 = vmatpush1.msra.mxu0 0.0
        %1960 = vmatprep.subr.mxu0 0.0
        %1961 = vmatpush1.msra.mxu0 0.0
        %1962 = vmatprep.subr.mxu0 0.0
        %1963 = vmatpush1.msra.mxu0 0.0
        %1964 = vmatprep.subr.mxu0 0.0
        %1965 = vmatpush1.msra.mxu0 0.0
        %1966 = vmatprep.subr.mxu0 0.0
        %1967 = vmatpush1.msra.mxu0 0.0
        %1968 = vmatprep.subr.mxu0 0.0
        %1969 = vmatpush1.msra.mxu0 0.0
        %1970 = vmatprep.subr.mxu0 0.0
        %1971 = vmatpush1.msra.mxu0 0.0
        %1972 = vmatprep.subr.mxu0 0.0
        %1973 = vmatpush1.msra.mxu0 0.0
        %1974 = vmatprep.subr.mxu0 0.0
        %1975 = vmatpush1.msra.mxu0 0.0
        %1976 = vmatprep.subr.mxu0 0.0
        %1977 = vmatpush1.msra.mxu0 0.0
        %1978 = vmatprep.subr.mxu0 0.0
        %1979 = vmatpush1.msra.mxu0 0.0
        %1980 = vmatprep.subr.mxu0 0.0
        %1981 = vmatpush1.msra.mxu0 0.0
        %1982 = vmatprep.subr.mxu0 0.0
        %1983 = vmatpush1.msra.mxu0 0.0
        %1984 = vmatprep.subr.mxu0 0.0
        %1985 = vmatpush1.msra.mxu0 0.0
        %1986 = vmatprep.subr.mxu0 0.0
        %1987 = vmatpush1.msra.mxu0 0.0
        %1988 = vmatprep.subr.mxu0 0.0
        %1989 = vmatpush1.msra.mxu0 0.0
        %1990 = vmatprep.subr.mxu0 0.0
        %1991 = vmatpush1.msra.mxu0 0.0
        %1992 = vmatprep.subr.mxu0 0.0
        %1993 = vmatpush1.msra.mxu0 0.0
        %1994 = vmatprep.subr.mxu0 0.0
        %1995 = vmatpush1.msra.mxu0 0.0
        %1996 = vmatprep.mubr.f32.mxu0 0.0
        %1997 = vmatmul.mubr.f32.gmra.mrb[0].mxu0 %v1927
        %v1998 = vpop.f32.mrb[0].mxu0
        %v1999 = vadd.f32 0.0, %v1998
        %v2000 = vpop.f32.mrb[0].mxu0
        %2001 = vmatprep.mubr.f32.mxu0 0.0
        %2002 = vmatmul.mubr.f32.gmra.mrb[0].mxu0 %v1930
        %v2003 = vpop.f32.mrb[0].mxu0
        %v2004 = vadd.f32 0.0, %v2003
        %v2005 = vpop.f32.mrb[0].mxu0
        %2006 = vdwg.mxu0
        %v2008 = vsel %vm1764, %v1806, 0
        %v2011 = vsel %vm1764, %v1808, 0
        %2013 = vmatprep.subr.mxu0 0.0
        %2014 = vmatpush1.msra.mxu0 %v1841
        %2015 = vmatprep.subr.mxu0 0.0
        %2016 = vmatpush1.msra.mxu0 %v1842
        %2017 = vmatprep.subr.mxu0 0.0
        %2018 = vmatpush1.msra.mxu0 0.0
        %2019 = vmatprep.subr.mxu0 0.0
        %2020 = vmatpush1.msra.mxu0 0.0
        %2021 = vmatprep.subr.mxu0 0.0
        %2022 = vmatpush1.msra.mxu0 0.0
        %2023 = vmatprep.subr.mxu0 0.0
        %2024 = vmatpush1.msra.mxu0 0.0
        %2025 = vmatprep.subr.mxu0 0.0
        %2026 = vmatpush1.msra.mxu0 0.0
        %2027 = vmatprep.subr.mxu0 0.0
        %2028 = vmatpush1.msra.mxu0 0.0
        %2029 = vmatprep.subr.mxu0 0.0
        %2030 = vmatpush1.msra.mxu0 0.0
        %2031 = vmatprep.subr.mxu0 0.0
        %2032 = vmatpush1.msra.mxu0 0.0
        %2033 = vmatprep.subr.mxu0 0.0
        %2034 = vmatpush1.msra.mxu0 0.0
        %2035 = vmatprep.subr.mxu0 0.0
        %2036 = vmatpush1.msra.mxu0 0.0
        %2037 = vmatprep.subr.mxu0 0.0
        %2038 = vmatpush1.msra.mxu0 0.0
        %2039 = vmatprep.subr.mxu0 0.0
        %2040 = vmatpush1.msra.mxu0 0.0
        %2041 = vmatprep.subr.mxu0 0.0
        %2042 = vmatpush1.msra.mxu0 0.0
        %2043 = vmatprep.subr.mxu0 0.0
        %2044 = vmatpush1.msra.mxu0 0.0
        %2045 = vmatprep.subr.mxu0 0.0
        %2046 = vmatpush1.msra.mxu0 0.0
        %2047 = vmatprep.subr.mxu0 0.0
        %2048 = vmatpush1.msra.mxu0 0.0
        %2049 = vmatprep.subr.mxu0 0.0
        %2050 = vmatpush1.msra.mxu0 0.0
        %2051 = vmatprep.subr.mxu0 0.0
        %2052 = vmatpush1.msra.mxu0 0.0
        %2053 = vmatprep.subr.mxu0 0.0
        %2054 = vmatpush1.msra.mxu0 0.0
        %2055 = vmatprep.subr.mxu0 0.0
        %2056 = vmatpush1.msra.mxu0 0.0
        %2057 = vmatprep.subr.mxu0 0.0
        %2058 = vmatpush1.msra.mxu0 0.0
        %2059 = vmatprep.subr.mxu0 0.0
        %2060 = vmatpush1.msra.mxu0 0.0
        %2061 = vmatprep.subr.mxu0 0.0
        %2062 = vmatpush1.msra.mxu0 0.0
        %2063 = vmatprep.subr.mxu0 0.0
        %2064 = vmatpush1.msra.mxu0 0.0
        %2065 = vmatprep.subr.mxu0 0.0
        %2066 = vmatpush1.msra.mxu0 0.0
        %2067 = vmatprep.subr.mxu0 0.0
        %2068 = vmatpush1.msra.mxu0 0.0
        %2069 = vmatprep.subr.mxu0 0.0
        %2070 = vmatpush1.msra.mxu0 0.0
        %2071 = vmatprep.subr.mxu0 0.0
        %2072 = vmatpush1.msra.mxu0 0.0
        %2073 = vmatprep.subr.mxu0 0.0
        %2074 = vmatpush1.msra.mxu0 0.0
        %2075 = vmatprep.subr.mxu0 0.0
        %2076 = vmatpush1.msra.mxu0 0.0
        %2077 = vmatprep.mubr.f32.mxu0 0.0
        %2078 = vmatmul.mubr.f32.gmra.mrb[0].mxu0 %v2008
        %v2079 = vpop.f32.mrb[0].mxu0
        %v2080 = vadd.f32 0.0, %v2079
        %v2081 = vpop.f32.mrb[0].mxu0
        %2082 = vmatprep.mubr.f32.mxu0 0.0
        %2083 = vmatmul.mubr.f32.gmra.mrb[0].mxu0 %v2011
        %v2084 = vpop.f32.mrb[0].mxu0
        %v2085 = vadd.f32 0.0, %v2084
        %v2086 = vpop.f32.mrb[0].mxu0
        %2087 = vdwg.mxu0
        %v2089 = vsel %vm1764, %v1810, 0
        %v2092 = vsel %vm1764, %v1812, 0
        %2094 = vmatprep.subr.mxu0 0.0
        %2095 = vmatpush1.msra.mxu0 %v1843
        %2096 = vmatprep.subr.mxu0 0.0
        %2097 = vmatpush1.msra.mxu0 %v1844
        %2098 = vmatprep.subr.mxu0 0.0
        %2099 = vmatpush1.msra.mxu0 0.0
        %2100 = vmatprep.subr.mxu0 0.0
        %2101 = vmatpush1.msra.mxu0 0.0
        %2102 = vmatprep.subr.mxu0 0.0
        %2103 = vmatpush1.msra.mxu0 0.0
        %2104 = vmatprep.subr.mxu0 0.0
        %2105 = vmatpush1.msra.mxu0 0.0
        %2106 = vmatprep.subr.mxu0 0.0
        %2107 = vmatpush1.msra.mxu0 0.0
        %2108 = vmatprep.subr.mxu0 0.0
        %2109 = vmatpush1.msra.mxu0 0.0
        %2110 = vmatprep.subr.mxu0 0.0
        %2111 = vmatpush1.msra.mxu0 0.0
        %2112 = vmatprep.subr.mxu0 0.0
        %2113 = vmatpush1.msra.mxu0 0.0
        %2114 = vmatprep.subr.mxu0 0.0
        %2115 = vmatpush1.msra.mxu0 0.0
        %2116 = vmatprep.subr.mxu0 0.0
        %2117 = vmatpush1.msra.mxu0 0.0
        %2118 = vmatprep.subr.mxu0 0.0
        %2119 = vmatpush1.msra.mxu0 0.0
        %2120 = vmatprep.subr.mxu0 0.0
        %2121 = vmatpush1.msra.mxu0 0.0
        %2122 = vmatprep.subr.mxu0 0.0
        %2123 = vmatpush1.msra.mxu0 0.0
        %2124 = vmatprep.subr.mxu0 0.0
        %2125 = vmatpush1.msra.mxu0 0.0
        %2126 = vmatprep.subr.mxu0 0.0
        %2127 = vmatpush1.msra.mxu0 0.0
        %2128 = vmatprep.subr.mxu0 0.0
        %2129 = vmatpush1.msra.mxu0 0.0
        %2130 = vmatprep.subr.mxu0 0.0
        %2131 = vmatpush1.msra.mxu0 0.0
        %2132 = vmatprep.subr.mxu0 0.0
        %2133 = vmatpush1.msra.mxu0 0.0
        %2134 = vmatprep.subr.mxu0 0.0
        %2135 = vmatpush1.msra.mxu0 0.0
        %2136 = vmatprep.subr.mxu0 0.0
        %2137 = vmatpush1.msra.mxu0 0.0
        %2138 = vmatprep.subr.mxu0 0.0
        %2139 = vmatpush1.msra.mxu0 0.0
        %2140 = vmatprep.subr.mxu0 0.0
        %2141 = vmatpush1.msra.mxu0 0.0
        %2142 = vmatprep.subr.mxu0 0.0
        %2143 = vmatpush1.msra.mxu0 0.0
        %2144 = vmatprep.subr.mxu0 0.0
        %2145 = vmatpush1.msra.mxu0 0.0
        %2146 = vmatprep.subr.mxu0 0.0
        %2147 = vmatpush1.msra.mxu0 0.0
        %2148 = vmatprep.subr.mxu0 0.0
        %2149 = vmatpush1.msra.mxu0 0.0
        %2150 = vmatprep.subr.mxu0 0.0
        %2151 = vmatpush1.msra.mxu0 0.0
        %2152 = vmatprep.subr.mxu0 0.0
        %2153 = vmatpush1.msra.mxu0 0.0
        %2154 = vmatprep.subr.mxu0 0.0
        %2155 = vmatpush1.msra.mxu0 0.0
        %2156 = vmatprep.subr.mxu0 0.0
        %2157 = vmatpush1.msra.mxu0 0.0
        %2158 = vmatprep.mubr.f32.mxu0 0.0
        %2159 = vmatmul.mubr.f32.gmra.mrb[0].mxu0 %v2089
        %v2160 = vpop.f32.mrb[0].mxu0
        %v2161 = vadd.f32 0.0, %v2160
        %v2162 = vpop.f32.mrb[0].mxu0
        %2163 = vmatprep.mubr.f32.mxu0 0.0
        %2164 = vmatmul.mubr.f32.gmra.mrb[0].mxu0 %v2092
        %v2165 = vpop.f32.mrb[0].mxu0
        %v2166 = vadd.f32 0.0, %v2165
        %v2167 = vpop.f32.mrb[0].mxu0
        %2168 = vdwg.mxu0
        %v2169 = vrcp.pop %v1815
        %v2170 = vmul.f32 %v1918, %v2169
        %v2171 = vrcp.pop %v1818
        %v2172 = vmul.f32 %v1923, %v2171
        %v2173 = vrcp.pop %v1821
        %v2174 = vmul.f32 %v1999, %v2173
        %v2175 = vrcp.pop %v1824
        %v2176 = vmul.f32 %v2004, %v2175
        %v2177 = vrcp.pop %v1827
        %v2178 = vmul.f32 %v2080, %v2177
        %v2179 = vrcp.pop %v1830
        %v2180 = vmul.f32 %v2085, %v2179
        %v2181 = vrcp.pop %v1833
        %v2182 = vmul.f32 %v2161, %v2181
        %v2183 = vrcp.pop %v1836
        %v2184 = vmul.f32 %v2166, %v2183
        %v2185 = vcombine.low %v2170, %v2178
        %v2186 = vcombine.high %v2170, %v2178
        %v2188 = vunpack.c.l.s4 1983009808
        %v2189 = vunpack.c.0.s8 %v2188
        %v2190 = vlaneseq
        %v2191 = vshrl.u32 %v2190, 7
        %v2192 = vsub.s32 %v2189, %v2191
        %v2193 = vrot.slane %v2185, %v2192
        %v2195 = vunpack.c.l.s4 1983009808
        %v2196 = vunpack.c.0.s8 %v2195
        %v2197 = vlaneseq
        %v2198 = vshrl.u32 %v2197, 7
        %v2199 = vsub.s32 %v2196, %v2198
        %v2200 = vrot.slane %v2186, %v2199
        %v2201 = vcombine.low %v2174, %v2182
        %v2202 = vcombine.high %v2174, %v2182
        %v2204 = vunpack.c.l.s4 1983009808
        %v2205 = vunpack.c.0.s8 %v2204
        %v2206 = vlaneseq
        %v2207 = vshrl.u32 %v2206, 7
        %v2208 = vsub.s32 %v2205, %v2207
        %v2209 = vrot.slane %v2201, %v2208
        %v2211 = vunpack.c.l.s4 1983009808
        %v2212 = vunpack.c.0.s8 %v2211
        %v2213 = vlaneseq
        %v2214 = vshrl.u32 %v2213, 7
        %v2215 = vsub.s32 %v2212, %v2214
        %v2216 = vrot.slane %v2202, %v2215
        %v2217 = vcombine.low %v2193, %v2209
        %v2218 = vcombine.high %v2193, %v2209
        %v2220 = vunpack.c.l.s4 1934713408
        %v2221 = vunpack.c.0.s8 %v2220
        %v2222 = vlaneseq
        %v2223 = vshrl.u32 %v2222, 7
        %v2224 = vsub.s32 %v2221, %v2223
        %v2225 = vrot.slane %v2217, %v2224
        %v2227 = vunpack.c.l.s4 1934713408
        %v2228 = vunpack.c.0.s8 %v2227
        %v2229 = vlaneseq
        %v2230 = vshrl.u32 %v2229, 7
        %v2231 = vsub.s32 %v2228, %v2230
        %v2232 = vrot.slane %v2218, %v2231
        %v2233 = vcombine.low %v2200, %v2216
        %v2234 = vcombine.high %v2200, %v2216
        %v2236 = vunpack.c.l.s4 1934713408
        %v2237 = vunpack.c.0.s8 %v2236
        %v2238 = vlaneseq
        %v2239 = vshrl.u32 %v2238, 7
        %v2240 = vsub.s32 %v2237, %v2239
        %v2241 = vrot.slane %v2233, %v2240
        %v2243 = vunpack.c.l.s4 1934713408
        %v2244 = vunpack.c.0.s8 %v2243
        %v2245 = vlaneseq
        %v2246 = vshrl.u32 %v2245, 7
        %v2247 = vsub.s32 %v2244, %v2246
        %v2248 = vrot.slane %v2234, %v2247
        %v2249 = vcombine.high %v2225, 0.0
        %v2250 = vcombine.high %v2232, 0.0
        %v2251 = vcombine.high %v2241, 0.0
        %v2252 = vcombine.high %v2248, 0.0
        %v2253 = vcombine.low %v2172, %v2180
        %v2254 = vcombine.high %v2172, %v2180
        %v2256 = vunpack.c.l.s4 1983009808
        %v2257 = vunpack.c.0.s8 %v2256
        %v2258 = vlaneseq
        %v2259 = vshrl.u32 %v2258, 7
        %v2260 = vsub.s32 %v2257, %v2259
        %v2261 = vrot.slane %v2253, %v2260
        %v2263 = vunpack.c.l.s4 1983009808
        %v2264 = vunpack.c.0.s8 %v2263
        %v2265 = vlaneseq
        %v2266 = vshrl.u32 %v2265, 7
        %v2267 = vsub.s32 %v2264, %v2266
        %v2268 = vrot.slane %v2254, %v2267
        %v2269 = vcombine.low %v2176, %v2184
        %v2270 = vcombine.high %v2176, %v2184
        %v2272 = vunpack.c.l.s4 1983009808
        %v2273 = vunpack.c.0.s8 %v2272
        %v2274 = vlaneseq
        %v2275 = vshrl.u32 %v2274, 7
        %v2276 = vsub.s32 %v2273, %v2275
        %v2277 = vrot.slane %v2269, %v2276
        %v2279 = vunpack.c.l.s4 1983009808
        %v2280 = vunpack.c.0.s8 %v2279
        %v2281 = vlaneseq
        %v2282 = vshrl.u32 %v2281, 7
        %v2283 = vsub.s32 %v2280, %v2282
        %v2284 = vrot.slane %v2270, %v2283
        %v2285 = vcombine.low %v2261, %v2277
        %v2286 = vcombine.high %v2261, %v2277
        %v2288 = vunpack.c.l.s4 1934713408
        %v2289 = vunpack.c.0.s8 %v2288
        %v2290 = vlaneseq
        %v2291 = vshrl.u32 %v2290, 7
        %v2292 = vsub.s32 %v2289, %v2291
        %v2293 = vrot.slane %v2285, %v2292
        %v2295 = vunpack.c.l.s4 1934713408
        %v2296 = vunpack.c.0.s8 %v2295
        %v2297 = vlaneseq
        %v2298 = vshrl.u32 %v2297, 7
        %v2299 = vsub.s32 %v2296, %v2298
        %v2300 = vrot.slane %v2286, %v2299
        %v2301 = vcombine.low %v2268, %v2284
        %v2302 = vcombine.high %v2268, %v2284
        %v2304 = vunpack.c.l.s4 1934713408
        %v2305 = vunpack.c.0.s8 %v2304
        %v2306 = vlaneseq
        %v2307 = vshrl.u32 %v2306, 7
        %v2308 = vsub.s32 %v2305, %v2307
        %v2309 = vrot.slane %v2301, %v2308
        %v2311 = vunpack.c.l.s4 1934713408
        %v2312 = vunpack.c.0.s8 %v2311
        %v2313 = vlaneseq
        %v2314 = vshrl.u32 %v2313, 7
        %v2315 = vsub.s32 %v2312, %v2314
        %v2316 = vrot.slane %v2302, %v2315
        %v2317 = vcombine.high %v2293, 0.0
        %v2318 = vcombine.high %v2300, 0.0
        %v2319 = vcombine.high %v2309, 0.0
        %v2320 = vcombine.high %v2316, 0.0
        %v2321 = vcombine.low %v2225, %v2232
        %v2323 = vunpack.c.l.s4 1983009808
        %v2324 = vunpack.c.0.s8 %v2323
        %v2325 = vlaneseq
        %v2326 = vshrl.u32 %v2325, 7
        %v2327 = vsub.s32 %v2324, %v2326
        %v2328 = vrot.slane %v2321, %v2327
        %v2329 = vcombine.low %v2249, %v2250
        %v2331 = vunpack.c.l.s4 1983009808
        %v2332 = vunpack.c.0.s8 %v2331
        %v2333 = vlaneseq
        %v2334 = vshrl.u32 %v2333, 7
        %v2335 = vsub.s32 %v2332, %v2334
        %v2336 = vrot.slane %v2329, %v2335
        %v2337 = vcombine.low %v2241, %v2248
        %v2339 = vunpack.c.l.s4 1983009808
        %v2340 = vunpack.c.0.s8 %v2339
        %v2341 = vlaneseq
        %v2342 = vshrl.u32 %v2341, 7
        %v2343 = vsub.s32 %v2340, %v2342
        %v2344 = vrot.slane %v2337, %v2343
        %v2345 = vcombine.low %v2251, %v2252
        %v2347 = vunpack.c.l.s4 1983009808
        %v2348 = vunpack.c.0.s8 %v2347
        %v2349 = vlaneseq
        %v2350 = vshrl.u32 %v2349, 7
        %v2351 = vsub.s32 %v2348, %v2350
        %v2352 = vrot.slane %v2345, %v2351
        %v2353 = vcombine.low %v2328, %v2336
        %v2354 = vcombine.high %v2328, %v2336
        %v2356 = vunpack.c.l.s4 1934713408
        %v2357 = vunpack.c.0.s8 %v2356
        %v2358 = vlaneseq
        %v2359 = vshrl.u32 %v2358, 7
        %v2360 = vsub.s32 %v2357, %v2359
        %v2361 = vrot.slane %v2353, %v2360
        %v2363 = vunpack.c.l.s4 1934713408
        %v2364 = vunpack.c.0.s8 %v2363
        %v2365 = vlaneseq
        %v2366 = vshrl.u32 %v2365, 7
        %v2367 = vsub.s32 %v2364, %v2366
        %v2368 = vrot.slane %v2354, %v2367
        %v2369 = vcombine.low %v2344, %v2352
        %v2370 = vcombine.high %v2344, %v2352
        %v2372 = vunpack.c.l.s4 1934713408
        %v2373 = vunpack.c.0.s8 %v2372
        %v2374 = vlaneseq
        %v2375 = vshrl.u32 %v2374, 7
        %v2376 = vsub.s32 %v2373, %v2375
        %v2377 = vrot.slane %v2369, %v2376
        %v2379 = vunpack.c.l.s4 1934713408
        %v2380 = vunpack.c.0.s8 %v2379
        %v2381 = vlaneseq
        %v2382 = vshrl.u32 %v2381, 7
        %v2383 = vsub.s32 %v2380, %v2382
        %v2384 = vrot.slane %v2370, %v2383
        %v2385 = vcombine.low %v2361, %v2377
        %v2386 = vcombine.high %v2361, %v2377
        %v2387 = vcombine.low %v2368, %v2384
        %v2388 = vcombine.high %v2368, %v2384
        %v2389 = vcombine.low %v2293, %v2300
        %v2391 = vunpack.c.l.s4 1983009808
        %v2392 = vunpack.c.0.s8 %v2391
        %v2393 = vlaneseq
        %v2394 = vshrl.u32 %v2393, 7
        %v2395 = vsub.s32 %v2392, %v2394
        %v2396 = vrot.slane %v2389, %v2395
        %v2397 = vcombine.low %v2317, %v2318
        %v2399 = vunpack.c.l.s4 1983009808
        %v2400 = vunpack.c.0.s8 %v2399
        %v2401 = vlaneseq
        %v2402 = vshrl.u32 %v2401, 7
        %v2403 = vsub.s32 %v2400, %v2402
        %v2404 = vrot.slane %v2397, %v2403
        %v2405 = vcombine.low %v2309, %v2316
        %v2407 = vunpack.c.l.s4 1983009808
        %v2408 = vunpack.c.0.s8 %v2407
        %v2409 = vlaneseq
        %v2410 = vshrl.u32 %v2409, 7
        %v2411 = vsub.s32 %v2408, %v2410
        %v2412 = vrot.slane %v2405, %v2411
        %v2413 = vcombine.low %v2319, %v2320
        %v2415 = vunpack.c.l.s4 1983009808
        %v2416 = vunpack.c.0.s8 %v2415
        %v2417 = vlaneseq
        %v2418 = vshrl.u32 %v2417, 7
        %v2419 = vsub.s32 %v2416, %v2418
        %v2420 = vrot.slane %v2413, %v2419
        %v2421 = vcombine.low %v2396, %v2404
        %v2422 = vcombine.high %v2396, %v2404
        %v2424 = vunpack.c.l.s4 1934713408
        %v2425 = vunpack.c.0.s8 %v2424
        %v2426 = vlaneseq
        %v2427 = vshrl.u32 %v2426, 7
        %v2428 = vsub.s32 %v2425, %v2427
        %v2429 = vrot.slane %v2421, %v2428
        %v2431 = vunpack.c.l.s4 1934713408
        %v2432 = vunpack.c.0.s8 %v2431
        %v2433 = vlaneseq
        %v2434 = vshrl.u32 %v2433, 7
        %v2435 = vsub.s32 %v2432, %v2434
        %v2436 = vrot.slane %v2422, %v2435
        %v2437 = vcombine.low %v2412, %v2420
        %v2438 = vcombine.high %v2412, %v2420
        %v2440 = vunpack.c.l.s4 1934713408
        %v2441 = vunpack.c.0.s8 %v2440
        %v2442 = vlaneseq
        %v2443 = vshrl.u32 %v2442, 7
        %v2444 = vsub.s32 %v2441, %v2443
        %v2445 = vrot.slane %v2437, %v2444
        %v2447 = vunpack.c.l.s4 1934713408
        %v2448 = vunpack.c.0.s8 %v2447
        %v2449 = vlaneseq
        %v2450 = vshrl.u32 %v2449, 7
        %v2451 = vsub.s32 %v2448, %v2450
        %v2452 = vrot.slane %v2438, %v2451
        %v2453 = vcombine.low %v2429, %v2445
        %v2454 = vcombine.high %v2429, %v2445
        %v2455 = vcombine.low %v2436, %v2452
        %v2456 = vcombine.high %v2436, %v2452
        %2459 = vrot.lane.b32.xlu0 %v2386, 32
        %v2460 = vpop.permute.xlu0 %2459
        %2461 = vrot.lane.b32.xlu0 %v2454, 32
        %v2462 = vpop.permute.xlu0 %2461
        %2467 = vrot.lane.b32.xlu0 %v2387, 64
        %v2468 = vpop.permute.xlu0 %2467
        %2469 = vrot.lane.b32.xlu0 %v2455, 64
        %v2470 = vpop.permute.xlu0 %2469
        %2475 = vrot.lane.b32.xlu0 %v2388, 96
        %v2476 = vpop.permute.xlu0 %2475
        %2477 = vrot.lane.b32.xlu0 %v2456, 96
        %v2478 = vpop.permute.xlu0 %2477
        %v2481 = vsel %vm1415, %v2385, %v2460
        %v2482 = vsel %vm1415, %v2453, %v2462
        %vm2483 = vcmask 523264
        %v2484 = vsel %vm2483, %v2481, %v2468
        %v2485 = vsel %vm2483, %v2482, %v2470
        %vm2486 = vcmask 785408
        %v2487 = vsel %vm2486, %v2484, %v2476
        %v2488 = vsel %vm2486, %v2485, %v2478
        %v2489 = vld [vmem:[#allocation10] sm:$0xff]
        %v2490 = vld [vmem:[#allocation10 + $0x8] sm:$0xff]
        %v2491 = vld [vmem:[#allocation10 + $0x10] sm:$0xff]
        %v2492 = vld [vmem:[#allocation10 + $0x18] sm:$0xff]
        %v2493 = vld [vmem:[#allocation10 + $0x20] sm:$0xff]
        %v2494 = vld [vmem:[#allocation10 + $0x28] sm:$0xff]
        %v2495 = vld [vmem:[#allocation10 + $0x30] sm:$0xff]
        %v2496 = vld [vmem:[#allocation10 + $0x38] sm:$0xff]
        %v2497 = vld [vmem:[#allocation10 + $0x40] sm:$0xff]
        %v2498 = vld [vmem:[#allocation10 + $0x48] sm:$0xff]
        %v2499 = vld [vmem:[#allocation10 + $0x50] sm:$0xff]
        %v2500 = vld [vmem:[#allocation10 + $0x58] sm:$0xff]
        %v2501 = vld [vmem:[#allocation10 + $0x60] sm:$0xff]
        %v2502 = vld [vmem:[#allocation10 + $0x68] sm:$0xff]
        %v2503 = vld [vmem:[#allocation10 + $0x70] sm:$0xff]
        %v2504 = vld [vmem:[#allocation10 + $0x78] sm:$0xff]
        %v2505 = vld [vmem:[%s4] sm:$0x1]
        %v2507 = vlaneseq
        %v2508 = vshrl.u32 %v2507, 7
        %v2509 = vsub.s32 0, %v2508
        %v2510 = vrot.slane %v2505, %v2509
        %2512 = vmatprep.subr.mxu0 0.0
        %2513 = vmatpush1.msra.mxu0 %v2489
        %2514 = vmatprep.subr.mxu0 0.0
        %2515 = vmatpush1.msra.mxu0 %v2490
        %2516 = vmatprep.subr.mxu0 0.0
        %2517 = vmatpush1.msra.mxu0 %v2491
        %2518 = vmatprep.subr.mxu0 0.0
        %2519 = vmatpush1.msra.mxu0 %v2492
        %2520 = vmatprep.subr.mxu0 0.0
        %2521 = vmatpush1.msra.mxu0 %v2493
        %2522 = vmatprep.subr.mxu0 0.0
        %2523 = vmatpush1.msra.mxu0 %v2494
        %2524 = vmatprep.subr.mxu0 0.0
        %2525 = vmatpush1.msra.mxu0 %v2495
        %2526 = vmatprep.subr.mxu0 0.0
        %2527 = vmatpush1.msra.mxu0 %v2496
        %2528 = vmatprep.subr.mxu0 0.0
        %2529 = vmatpush1.msra.mxu0 %v2497
        %2530 = vmatprep.subr.mxu0 0.0
        %2531 = vmatpush1.msra.mxu0 %v2498
        %2532 = vmatprep.subr.mxu0 0.0
        %2533 = vmatpush1.msra.mxu0 %v2499
        %2534 = vmatprep.subr.mxu0 0.0
        %2535 = vmatpush1.msra.mxu0 %v2500
        %2536 = vmatprep.subr.mxu0 0.0
        %2537 = vmatpush1.msra.mxu0 %v2501
        %2538 = vmatprep.subr.mxu0 0.0
        %2539 = vmatpush1.msra.mxu0 %v2502
        %2540 = vmatprep.subr.mxu0 0.0
        %2541 = vmatpush1.msra.mxu0 %v2503
        %2542 = vmatprep.subr.mxu0 0.0
        %2543 = vmatpush1.msra.mxu0 %v2504
        %2544 = vmatprep.subr.mxu0 0.0
        %2545 = vmatpush1.msra.mxu0 0.0
        %2546 = vmatprep.subr.mxu0 0.0
        %2547 = vmatpush1.msra.mxu0 0.0
        %2548 = vmatprep.subr.mxu0 0.0
        %2549 = vmatpush1.msra.mxu0 0.0
        %2550 = vmatprep.subr.mxu0 0.0
        %2551 = vmatpush1.msra.mxu0 0.0
        %2552 = vmatprep.subr.mxu0 0.0
        %2553 = vmatpush1.msra.mxu0 0.0
        %2554 = vmatprep.subr.mxu0 0.0
        %2555 = vmatpush1.msra.mxu0 0.0
        %2556 = vmatprep.subr.mxu0 0.0
        %2557 = vmatpush1.msra.mxu0 0.0
        %2558 = vmatprep.subr.mxu0 0.0
        %2559 = vmatpush1.msra.mxu0 0.0
        %2560 = vmatprep.subr.mxu0 0.0
        %2561 = vmatpush1.msra.mxu0 0.0
        %2562 = vmatprep.subr.mxu0 0.0
        %2563 = vmatpush1.msra.mxu0 0.0
        %2564 = vmatprep.subr.mxu0 0.0
        %2565 = vmatpush1.msra.mxu0 0.0
        %2566 = vmatprep.subr.mxu0 0.0
        %2567 = vmatpush1.msra.mxu0 0.0
        %2568 = vmatprep.subr.mxu0 0.0
        %2569 = vmatpush1.msra.mxu0 0.0
        %2570 = vmatprep.subr.mxu0 0.0
        %2571 = vmatpush1.msra.mxu0 0.0
        %2572 = vmatprep.subr.mxu0 0.0
        %2573 = vmatpush1.msra.mxu0 0.0
        %2574 = vmatprep.subr.mxu0 0.0
        %2575 = vmatpush1.msra.mxu0 0.0
        %2576 = vmatprep.mubr.f32.mxu0 0.0
        %2577 = vmatmul.mubr.f32.gmra.mrb[0].mxu0 %v2487
        %v2578 = vpop.f32.mrb[0].mxu0
        %v2579 = vadd.f32 %v2510, %v2578
        %v2580 = vpop.f32.mrb[0].mxu0
        %2581 = vmatprep.mubr.f32.mxu0 0.0
        %2582 = vmatmul.mubr.f32.gmra.mrb[0].mxu0 %v2488
        %v2583 = vpop.f32.mrb[0].mxu0
        %v2584 = vadd.f32 %v2510, %v2583
        %v2585 = vpop.f32.mrb[0].mxu0
        %2586 = vdwg.mxu0
        %2587 = vst [vmem:[%s285] sm:$0xff] %v2579
        %2588 = vst [vmem:[%s285 + $0x8] sm:$0xff] %v2584
        %s2589 = sand.u32 %s155, 1
        %s2590 = scalar_lea.sflag [#allocation7], %s2589
        %s2591 = sand.u32 %s155, 1
        %s2592 = smul.addr %s2591, 16
        %s2593 = scalar_lea.vmem [#allocation11], %s2592
        // Predicated region
        $region57: #{tpu_custom_call.1} parent=39 // pred_check
          %p2594 = pneg %p165
        $region58: #{tpu_custom_call.1} parent=39 // pred_check_branch
          %2596 = sbr.rel (%p2594) target = $region60
        $region59: #{tpu_custom_call.1} parent=39 // pred_region
          %s2597 = smul.u32 2, %s28
          %s2599 = ssub.s32 256, 256
          %2600 = vsyncadd %s2590, %s2599
          %s2601 = smul.addr %s27, 2
          %s2602 = sadd.s32 %s2597, %s2601
          %s2603 = smul.addr %s2602, 128
          %s2604 = scalar_lea.hbm %s5, %s2603
          %s2605 = sshll.u32 %s2593, 4
          %s2606 = int_to_ptr.vmem [resolvable:$true] %s2605
          %2611 = dma.vmem_to_hbm [thread:$0]  %s2606, 256, %s2604, %s2590, 128, 128, 8
        $region60: #{tpu_custom_call.1} parent=39 // pred_fallthru
          _
      $region40: #{tpu_custom_call.1} parent=5 // pred_fallthru
        _
      %p2612 = scmp.le.s32.totalorder 2, %s18
      // Predicated region
      $region61: #{tpu_custom_call.1} parent=5 // pred_check
        %p2613 = pneg %p2612
      $region62: #{tpu_custom_call.1} parent=5 // pred_check_branch
        %2615 = sbr.rel (%p2613) target = $region64
      $region63: #{tpu_custom_call.1} parent=5 // pred_region
        %s2616 = ssub.s32 %s18, 2
        // Predicated region
        $region65: #{tpu_custom_call.1} parent=63 // pred_check
          %p2617 = pneg %p171
        $region66: #{tpu_custom_call.1} parent=63 // pred_check_branch
          %2619 = sbr.rel (%p2617) target = $region68
        $region67: #{tpu_custom_call.1} parent=63 // pred_region
          %s2620 = sand.u32 %s156, 1
          %s2621 = scalar_lea.sflag [#allocation7], %s2620
          %s2622 = sand.u32 %s156, 1
          %s2623 = smul.addr %s2622, 16
          %s2624 = scalar_lea.vmem [#allocation11], %s2623
          %2625 = dma.done %s2621, 256
        $region68: #{tpu_custom_call.1} parent=63 // pred_fallthru
          _
      $region64: #{tpu_custom_call.1} parent=5 // pred_fallthru
        _
    $region6: #{tpu_custom_call.1} parent=1 // loop_footer
      %s22 = sadd.s32 1, %s18
    $region7: #{tpu_custom_call.1} parent=1 // loop_footer_branch
      %17 = sbr.rel target = $region3
    $region8: #{tpu_custom_call.1} parent=1 // loop_exit
      _
    %2626 = vsyncpa [#allocation6], 1
    %s2627 = scalar_lea.sflag [#allocation6], 1
    %2628 = vsyncpa %s2627, 1
    %2629 = vsyncpa [#allocation9], 1
    %2630 = vsyncpa [#allocation7], 1
    %s2631 = scalar_lea.sflag [#allocation7], 1
    %2632 = vsyncpa %s2631, 1

</llo_original>
